<compile_context>
chip_gen: v5e
topology: v5e:2x2
jax: 0.10.0
libtpu: 0.0.40
codegen_flags: <defaults>
</compile_context>

<pallas_src>
import math
from functools import partial

import jax
import jax.numpy as jnp
from jax.experimental import pallas as pl
from jax.experimental.pallas import tpu as pltpu

_LOG2E = 1.4426950408889634  # log2(e)


def _coor_descent_kernel(s_ref, out_ref, *, n_iters, logk, logn,
                         eps, eps_init, eps_decay):
    """Eps-scaled coordinate descent on a (BM, N) block of routing logits.

    The eps schedule is static (Python floats) so the loop is fully unrolled
    at trace time with constant scale factors.  b is never materialised
    (s + b == min(s, -a_prev)); exp() is emitted as exp2() with log2(e)/eps
    folded into the scale; for the constant-eps tail the scale is folded into
    s once so those iterations drop the full-tile multiply entirely.
    """
    s = s_ref[...].astype(jnp.float32)                    # (BM, N), N on lanes

    ce = max(eps_init if eps_init is not None else eps, eps)

    # Iteration 1 hoisted: b0 == -s  =>  sb == 0  =>  logsumexp == log(N),
    # so a1 is a trace-time Python constant (no exp / reductions emitted).
    a = ce * (logk - logn)
    ce = max(ce * eps_decay, eps)

    s_c = None  # s * (log2(e)/eps), materialised once the schedule clamps

    for _ in range(n_iters - 1):
        c = _LOG2E / ce                                   # Python constant
        if ce == eps and eps_decay <= 1.0:
            # Constant-eps tail: fold the per-element scale into s (once).
            if s_c is None:
                s_c = s * c                               # one-time (BM, N) mul
            t = jnp.minimum(s_c, a * (-c))                # (BM, N), scaled
            m_row = jnp.max(t, axis=-1, keepdims=True)    # (BM, 1)
            p = jnp.exp2(t - m_row)                       # (BM, N)
            sum_p = jnp.sum(p, axis=-1, keepdims=True)    # (BM, 1)
            a = (ce * logk) - m_row * (ce / _LOG2E) - ce * jnp.log(sum_p)
        else:
            t = jnp.minimum(s, -a)                        # (BM, N)
            m_row = jnp.max(t, axis=-1, keepdims=True)    # (BM, 1)
            p = jnp.exp2((t - m_row) * c)                 # (BM, N)
            sum_p = jnp.sum(p, axis=-1, keepdims=True)    # (BM, 1)
            a = (ce * logk) - m_row - ce * jnp.log(sum_p)
        ce = max(ce * eps_decay, eps)

    # scores = exp((s + a + b) / ce)  with  s + a + b == min(s + a, 0)
    c = _LOG2E / ce
    if s_c is not None:                                   # ce_final == eps here
        scores = jnp.exp2(jnp.minimum(s_c + a * c, 0.0))
    else:
        scores = jnp.exp2(jnp.minimum(s + a, 0.0) * c)
    out_ref[...] = scores.astype(out_ref.dtype)


def coor_descent_pallas(s, *, n_iters, logk, eps, eps_init, eps_decay,
                        block_rows=None):
    """Row-wise eps-scaled coordinate descent over s of shape (M, N)."""
    assert n_iters >= 1, "coor_descent requires n_iters >= 1"
    m, n = s.shape
    s = s.astype(jnp.float32)

    m8 = ((m + 7) // 8) * 8                               # sublane-aligned rows

    if block_rows is None:
        # ~1 MiB of f32 per (BM, N) tile: amortises the per-grid-step pipeline
        # overhead and gives full-rate DMAs.  Per-step working set
        # (2 x in + 2 x out double buffers + a few elementwise temporaries)
        # stays well inside the v5e 16 MiB scoped default.
        target_elems = (1 << 20) // 4
        block_rows = max(8, min(1024, ((target_elems // max(n, 1)) // 8) * 8))

    bm = max(8, min(block_rows, m8))
    # Keep >= 2 grid steps when there is enough work so the "parallel" grid
    # axis can be split across both v7x TensorCores.
    if pl.cdiv(m, bm) < 2 and m8 >= 16:
        bm = max(8, ((m8 // 2 + 7) // 8) * 8)

    kern = partial(_coor_descent_kernel, n_iters=n_iters, logk=logk,
                   logn=math.log(n), eps=eps, eps_init=eps_init,
                   eps_decay=eps_decay)

    # No pad/slice round trip: grid = cdiv(m, bm); the last block over-reads,
    # rows are independent and out-of-bound rows are never written back.
    return pl.pallas_call(
        kern,
        out_shape=jax.ShapeDtypeStruct((m, n), jnp.float32),
        grid_spec=pltpu.PrefetchScalarGridSpec(
            num_scalar_prefetch=0,
            grid=(pl.cdiv(m, bm),),
            in_specs=[pl.BlockSpec((bm, n), lambda i: (i, 0))],
            out_specs=pl.BlockSpec((bm, n), lambda i: (i, 0)),
        ),
        compiler_params=pltpu.CompilerParams(
            dimension_semantics=("parallel",),
            vmem_limit_bytes=32 * 1024 * 1024),
    )(s)


class CoordinateDescentRouterPallas:
    """JAX/Pallas re-implementation of colt5's CoordinateDescentRouter forward."""

    def __init__(self, dim, *, straight_through=True, n_iters=20,
                 fetch_k_ratio=9 / 8, eps=0.03, eps_decay=0.7, eps_init=4.0,
                 num_routing_tokens=1, key=None):
        assert fetch_k_ratio >= 1.0
        self.dim = dim
        self.straight_through = straight_through
        self.n_iters = n_iters
        self.fetch_k_ratio = fetch_k_ratio
        self.eps = eps
        self.eps_decay = eps_decay
        self.eps_init = eps_init
        self.num_routing_tokens = num_routing_tokens
        key = jax.random.PRNGKey(1) if key is None else key
        # nn.Parameter(torch.randn(num_routing_tokens, dim)) -> deterministic init
        self.routing_token = jax.random.normal(
            key, (num_routing_tokens, dim), dtype=jnp.float32)

    def _scores(self, x, num_tokens):
        b, n, d = x.shape
        r = self.num_routing_tokens
        # einsum 'b n d, r d -> b r n': <1% of the FLOPs, pure layout plumbing.
        # Computed by XLA so the Pallas kernel receives s already flattened to
        # the lane-major (B*R, N) layout the CD loop wants.
        s = jnp.einsum('bnd,rd->brn', x.astype(jnp.float32),
                       self.routing_token.astype(jnp.float32))
        s_flat = s.reshape(b * r, n)
        effective_k = min(num_tokens * self.fetch_k_ratio, float(n))
        logk = math.log(max(effective_k, 1e-20))
        return coor_descent_pallas(
            s_flat, n_iters=self.n_iters, logk=logk, eps=self.eps,
            eps_init=self.eps_init, eps_decay=self.eps_decay)      # (B*R, N)

    def __call__(self, x, *, num_tokens):
        b, n, d = x.shape
        r = self.num_routing_tokens
        assert n > num_tokens, "only the main (n > num_tokens) branch implemented"

        scores_flat = self._scores(x, num_tokens)              # (B*R, N)

        # repeat(x, 'b ... -> (b r) ...'); skip the copy for the default r == 1
        x_rep = x if r == 1 else jnp.repeat(x, r, axis=0)      # (B*R, N, D)

        sel_scores, sel_indices = jax.lax.top_k(scores_flat, num_tokens)

        if self.straight_through:
            # forward value becomes exactly 1.0, gradient flows through sel_scores
            sel_scores = sel_scores + jax.lax.stop_gradient(1.0 - sel_scores)

        routed_tokens = jnp.take_along_axis(
            x_rep, sel_indices[:, :, None], axis=1)            # (B*R, k, D)

        # has_route_dim is False for the default num_routing_tokens == 1, so
        # indices/scores stay flat: (B*R, k) == (B, k).
        return sel_indices, sel_scores, routed_tokens, None


def _reference_scores(x, routing_token, *, num_tokens, n_iters, fetch_k_ratio,
                      eps, eps_init, eps_decay):
    """Pure-JAX reference of score matmul + coor_descent (un-optimized form)."""
    b, n, d = x.shape
    s = jnp.einsum('bnd,rd->brn', x, routing_token).reshape(-1, n)
    effective_k = min(num_tokens * fetch_k_ratio, float(n))
    logk = math.log(max(effective_k, 1e-20))
    a = jnp.zeros((s.shape[0], 1), jnp.float32)
    bb = -s
    ce = max(eps_init if eps_init is not None else eps, eps)
    for _ in range(n_iters):
        sb = (s + bb) / ce
        lse = jax.scipy.special.logsumexp(sb, axis=-1, keepdims=True)
        a = ce * (logk - lse)
        bb = -jnp.maximum(s + a, 0.0)
        ce = max(ce * eps_decay, eps)
    return jnp.exp((s + a + bb) / ce)


if __name__ == "__main__":
    B, N, D = 2, 256, 64
    NUM_TOKENS = 32

    key = jax.random.PRNGKey(0)
    kx, kw = jax.random.split(key)
    x = jax.random.normal(kx, (B, N, D), dtype=jnp.float32)

    router = CoordinateDescentRouterPallas(D, key=kw)

    indices, scores, routed_tokens, routed_mask = router(x, num_tokens=NUM_TOKENS)
    jax.block_until_ready((indices, scores, routed_tokens))

    # numerical sanity check of the kernel (scores before top-k)
    kernel_scores = router._scores(x, NUM_TOKENS)               # (B, N) for R=1
    ref_scores = _reference_scores(
        x, router.routing_token, num_tokens=NUM_TOKENS, n_iters=router.n_iters,
        fetch_k_ratio=router.fetch_k_ratio, eps=router.eps,
        eps_init=router.eps_init, eps_decay=router.eps_decay)
    assert kernel_scores.shape == ref_scores.shape == (B, N)
    assert jnp.allclose(kernel_scores, ref_scores, atol=2e-3, rtol=2e-3), \
        "kernel scores mismatch vs reference"

    assert indices.shape == (B, NUM_TOKENS)
    assert scores.shape == (B, NUM_TOKENS)
    assert routed_tokens.shape == (B, NUM_TOKENS, D)
    assert routed_mask is None

    print("KERNEL_OK")
</pallas_src>

<mosaic_0001>
module attributes {stable_mosaic.version = 11 : i64} {
  func.func @_coor_descent_kernel(%arg0: i32, %arg1: memref<8x256xf32, #tpu.memory_space<vmem>>, %arg2: memref<8x256xf32, #tpu.memory_space<vmem>>) attributes {dimension_semantics = [#tpu.dimension_semantics<parallel>], iteration_bounds = array<i64: 1>, scalar_prefetch = 0 : i64, scratch_operands = 0 : i64, tpu.core_type = #tpu.core_type<tc>, window_params = [{transform_indices = @transform_0, window_bounds = array<i64: 8, 256>}, {transform_indices = @transform_1, window_bounds = array<i64: 8, 256>}]} {
    %c0 = arith.constant 0 : index
    %c0_0 = arith.constant 0 : index
    %0 = vector.load %arg1[%c0, %c0_0] : memref<8x256xf32, #tpu.memory_space<vmem>>, vector<8x256xf32>
    %cst = arith.constant 7.84663391 : f32
    %1 = vector.broadcast %cst : f32 to vector<8x256xf32>
    %2 = arith.minimumf %0, %1 : vector<8x256xf32>
    %cst_1 = arith.constant dense<0xFF800000> : vector<8xf32>
    %3 = vector.multi_reduction <maximumf>, %2, %cst_1 [1] : vector<8x256xf32> to vector<8xf32>
    %4 = vector.shape_cast %3 : vector<8xf32> to vector<8x1xf32>
    %5 = vector.broadcast %4 : vector<8x1xf32> to vector<8x256xf32>
    %6 = arith.subf %2, %5 : vector<8x256xf32>
    %cst_2 = arith.constant 0.515248239 : f32
    %7 = vector.broadcast %cst_2 : f32 to vector<8x256xf32>
    %8 = arith.mulf %6, %7 : vector<8x256xf32>
    %9 = math.exp2 %8 : vector<8x256xf32>
    %cst_3 = arith.constant dense<0.000000e+00> : vector<8xf32>
    %10 = vector.multi_reduction <add>, %9, %cst_3 [1] : vector<8x256xf32> to vector<8xf32>
    %11 = vector.shape_cast %10 : vector<8xf32> to vector<8x1xf32>
    %cst_4 = arith.constant 10.0338526 : f32
    %12 = vector.broadcast %cst_4 : f32 to vector<8x1xf32>
    %13 = arith.subf %12, %4 : vector<8x1xf32>
    %14 = math.log %11 : vector<8x1xf32>
    %cst_5 = arith.constant 2.800000e+00 : f32
    %15 = vector.broadcast %cst_5 : f32 to vector<8x1xf32>
    %16 = arith.mulf %15, %14 : vector<8x1xf32>
    %17 = arith.subf %13, %16 : vector<8x1xf32>
    %cst_6 = arith.constant 0.000000e+00 : f32
    %18 = vector.broadcast %cst_6 : f32 to vector<8x1xf32>
    %19 = arith.subf %18, %17 : vector<8x1xf32>
    %20 = vector.broadcast %19 : vector<8x1xf32> to vector<8x256xf32>
    %21 = arith.minimumf %0, %20 : vector<8x256xf32>
    %cst_7 = arith.constant dense<0xFF800000> : vector<8xf32>
    %22 = vector.multi_reduction <maximumf>, %21, %cst_7 [1] : vector<8x256xf32> to vector<8xf32>
    %23 = vector.shape_cast %22 : vector<8xf32> to vector<8x1xf32>
    %24 = vector.broadcast %23 : vector<8x1xf32> to vector<8x256xf32>
    %25 = arith.subf %21, %24 : vector<8x256xf32>
    %cst_8 = arith.constant 0.736068904 : f32
    %26 = vector.broadcast %cst_8 : f32 to vector<8x256xf32>
    %27 = arith.mulf %25, %26 : vector<8x256xf32>
    %28 = math.exp2 %27 : vector<8x256xf32>
    %cst_9 = arith.constant dense<0.000000e+00> : vector<8xf32>
    %29 = vector.multi_reduction <add>, %28, %cst_9 [1] : vector<8x256xf32> to vector<8xf32>
    %30 = vector.shape_cast %29 : vector<8xf32> to vector<8x1xf32>
    %cst_10 = arith.constant 7.0236969 : f32
    %31 = vector.broadcast %cst_10 : f32 to vector<8x1xf32>
    %32 = arith.subf %31, %23 : vector<8x1xf32>
    %33 = math.log %30 : vector<8x1xf32>
    %cst_11 = arith.constant 1.960000e+00 : f32
    %34 = vector.broadcast %cst_11 : f32 to vector<8x1xf32>
    %35 = arith.mulf %34, %33 : vector<8x1xf32>
    %36 = arith.subf %32, %35 : vector<8x1xf32>
    %cst_12 = arith.constant 0.000000e+00 : f32
    %37 = vector.broadcast %cst_12 : f32 to vector<8x1xf32>
    %38 = arith.subf %37, %36 : vector<8x1xf32>
    %39 = vector.broadcast %38 : vector<8x1xf32> to vector<8x256xf32>
    %40 = arith.minimumf %0, %39 : vector<8x256xf32>
    %cst_13 = arith.constant dense<0xFF800000> : vector<8xf32>
    %41 = vector.multi_reduction <maximumf>, %40, %cst_13 [1] : vector<8x256xf32> to vector<8xf32>
    %42 = vector.shape_cast %41 : vector<8xf32> to vector<8x1xf32>
    %43 = vector.broadcast %42 : vector<8x1xf32> to vector<8x256xf32>
    %44 = arith.subf %40, %43 : vector<8x256xf32>
    %cst_14 = arith.constant 1.05152702 : f32
    %45 = vector.broadcast %cst_14 : f32 to vector<8x256xf32>
    %46 = arith.mulf %44, %45 : vector<8x256xf32>
    %47 = math.exp2 %46 : vector<8x256xf32>
    %cst_15 = arith.constant dense<0.000000e+00> : vector<8xf32>
    %48 = vector.multi_reduction <add>, %47, %cst_15 [1] : vector<8x256xf32> to vector<8xf32>
    %49 = vector.shape_cast %48 : vector<8xf32> to vector<8x1xf32>
    %cst_16 = arith.constant 4.91658783 : f32
    %50 = vector.broadcast %cst_16 : f32 to vector<8x1xf32>
    %51 = arith.subf %50, %42 : vector<8x1xf32>
    %52 = math.log %49 : vector<8x1xf32>
    %cst_17 = arith.constant 1.372000e+00 : f32
    %53 = vector.broadcast %cst_17 : f32 to vector<8x1xf32>
    %54 = arith.mulf %53, %52 : vector<8x1xf32>
    %55 = arith.subf %51, %54 : vector<8x1xf32>
    %cst_18 = arith.constant 0.000000e+00 : f32
    %56 = vector.broadcast %cst_18 : f32 to vector<8x1xf32>
    %57 = arith.subf %56, %55 : vector<8x1xf32>
    %58 = vector.broadcast %57 : vector<8x1xf32> to vector<8x256xf32>
    %59 = arith.minimumf %0, %58 : vector<8x256xf32>
    %cst_19 = arith.constant dense<0xFF800000> : vector<8xf32>
    %60 = vector.multi_reduction <maximumf>, %59, %cst_19 [1] : vector<8x256xf32> to vector<8xf32>
    %61 = vector.shape_cast %60 : vector<8xf32> to vector<8x1xf32>
    %62 = vector.broadcast %61 : vector<8x1xf32> to vector<8x256xf32>
    %63 = arith.subf %59, %62 : vector<8x256xf32>
    %cst_20 = arith.constant 1.50218141 : f32
    %64 = vector.broadcast %cst_20 : f32 to vector<8x256xf32>
    %65 = arith.mulf %63, %64 : vector<8x256xf32>
    %66 = math.exp2 %65 : vector<8x256xf32>
    %cst_21 = arith.constant dense<0.000000e+00> : vector<8xf32>
    %67 = vector.multi_reduction <add>, %66, %cst_21 [1] : vector<8x256xf32> to vector<8xf32>
    %68 = vector.shape_cast %67 : vector<8xf32> to vector<8x1xf32>
    %cst_22 = arith.constant 3.44161153 : f32
    %69 = vector.broadcast %cst_22 : f32 to vector<8x1xf32>
    %70 = arith.subf %69, %61 : vector<8x1xf32>
    %71 = math.log %68 : vector<8x1xf32>
    %cst_23 = arith.constant 0.960399985 : f32
    %72 = vector.broadcast %cst_23 : f32 to vector<8x1xf32>
    %73 = arith.mulf %72, %71 : vector<8x1xf32>
    %74 = arith.subf %70, %73 : vector<8x1xf32>
    %cst_24 = arith.constant 0.000000e+00 : f32
    %75 = vector.broadcast %cst_24 : f32 to vector<8x1xf32>
    %76 = arith.subf %75, %74 : vector<8x1xf32>
    %77 = vector.broadcast %76 : vector<8x1xf32> to vector<8x256xf32>
    %78 = arith.minimumf %0, %77 : vector<8x256xf32>
    %cst_25 = arith.constant dense<0xFF800000> : vector<8xf32>
    %79 = vector.multi_reduction <maximumf>, %78, %cst_25 [1] : vector<8x256xf32> to vector<8xf32>
    %80 = vector.shape_cast %79 : vector<8xf32> to vector<8x1xf32>
    %81 = vector.broadcast %80 : vector<8x1xf32> to vector<8x256xf32>
    %82 = arith.subf %78, %81 : vector<8x256xf32>
    %cst_26 = arith.constant 2.14597344 : f32
    %83 = vector.broadcast %cst_26 : f32 to vector<8x256xf32>
    %84 = arith.mulf %82, %83 : vector<8x256xf32>
    %85 = math.exp2 %84 : vector<8x256xf32>
    %cst_27 = arith.constant dense<0.000000e+00> : vector<8xf32>
    %86 = vector.multi_reduction <add>, %85, %cst_27 [1] : vector<8x256xf32> to vector<8xf32>
    %87 = vector.shape_cast %86 : vector<8xf32> to vector<8x1xf32>
    %cst_28 = arith.constant 2.40912819 : f32
    %88 = vector.broadcast %cst_28 : f32 to vector<8x1xf32>
    %89 = arith.subf %88, %80 : vector<8x1xf32>
    %90 = math.log %87 : vector<8x1xf32>
    %cst_29 = arith.constant 6.722800e-01 : f32
    %91 = vector.broadcast %cst_29 : f32 to vector<8x1xf32>
    %92 = arith.mulf %91, %90 : vector<8x1xf32>
    %93 = arith.subf %89, %92 : vector<8x1xf32>
    %cst_30 = arith.constant 0.000000e+00 : f32
    %94 = vector.broadcast %cst_30 : f32 to vector<8x1xf32>
    %95 = arith.subf %94, %93 : vector<8x1xf32>
    %96 = vector.broadcast %95 : vector<8x1xf32> to vector<8x256xf32>
    %97 = arith.minimumf %0, %96 : vector<8x256xf32>
    %cst_31 = arith.constant dense<0xFF800000> : vector<8xf32>
    %98 = vector.multi_reduction <maximumf>, %97, %cst_31 [1] : vector<8x256xf32> to vector<8xf32>
    %99 = vector.shape_cast %98 : vector<8xf32> to vector<8x1xf32>
    %100 = vector.broadcast %99 : vector<8x1xf32> to vector<8x256xf32>
    %101 = arith.subf %97, %100 : vector<8x256xf32>
    %cst_32 = arith.constant 3.06567645 : f32
    %102 = vector.broadcast %cst_32 : f32 to vector<8x256xf32>
    %103 = arith.mulf %101, %102 : vector<8x256xf32>
    %104 = math.exp2 %103 : vector<8x256xf32>
    %cst_33 = arith.constant dense<0.000000e+00> : vector<8xf32>
    %105 = vector.multi_reduction <add>, %104, %cst_33 [1] : vector<8x256xf32> to vector<8xf32>
    %106 = vector.shape_cast %105 : vector<8xf32> to vector<8x1xf32>
    %cst_34 = arith.constant 1.68638968 : f32
    %107 = vector.broadcast %cst_34 : f32 to vector<8x1xf32>
    %108 = arith.subf %107, %99 : vector<8x1xf32>
    %109 = math.log %106 : vector<8x1xf32>
    %cst_35 = arith.constant 4.705960e-01 : f32
    %110 = vector.broadcast %cst_35 : f32 to vector<8x1xf32>
    %111 = arith.mulf %110, %109 : vector<8x1xf32>
    %112 = arith.subf %108, %111 : vector<8x1xf32>
    %cst_36 = arith.constant 0.000000e+00 : f32
    %113 = vector.broadcast %cst_36 : f32 to vector<8x1xf32>
    %114 = arith.subf %113, %112 : vector<8x1xf32>
    %115 = vector.broadcast %114 : vector<8x1xf32> to vector<8x256xf32>
    %116 = arith.minimumf %0, %115 : vector<8x256xf32>
    %cst_37 = arith.constant dense<0xFF800000> : vector<8xf32>
    %117 = vector.multi_reduction <maximumf>, %116, %cst_37 [1] : vector<8x256xf32> to vector<8xf32>
    %118 = vector.shape_cast %117 : vector<8xf32> to vector<8x1xf32>
    %119 = vector.broadcast %118 : vector<8x1xf32> to vector<8x256xf32>
    %120 = arith.subf %116, %119 : vector<8x256xf32>
    %cst_38 = arith.constant 4.37953758 : f32
    %121 = vector.broadcast %cst_38 : f32 to vector<8x256xf32>
    %122 = arith.mulf %120, %121 : vector<8x256xf32>
    %123 = math.exp2 %122 : vector<8x256xf32>
    %cst_39 = arith.constant dense<0.000000e+00> : vector<8xf32>
    %124 = vector.multi_reduction <add>, %123, %cst_39 [1] : vector<8x256xf32> to vector<8xf32>
    %125 = vector.shape_cast %124 : vector<8xf32> to vector<8x1xf32>
    %cst_40 = arith.constant 1.18047273 : f32
    %126 = vector.broadcast %cst_40 : f32 to vector<8x1xf32>
    %127 = arith.subf %126, %118 : vector<8x1xf32>
    %128 = math.log %125 : vector<8x1xf32>
    %cst_41 = arith.constant 0.329417199 : f32
    %129 = vector.broadcast %cst_41 : f32 to vector<8x1xf32>
    %130 = arith.mulf %129, %128 : vector<8x1xf32>
    %131 = arith.subf %127, %130 : vector<8x1xf32>
    %cst_42 = arith.constant 0.000000e+00 : f32
    %132 = vector.broadcast %cst_42 : f32 to vector<8x1xf32>
    %133 = arith.subf %132, %131 : vector<8x1xf32>
    %134 = vector.broadcast %133 : vector<8x1xf32> to vector<8x256xf32>
    %135 = arith.minimumf %0, %134 : vector<8x256xf32>
    %cst_43 = arith.constant dense<0xFF800000> : vector<8xf32>
    %136 = vector.multi_reduction <maximumf>, %135, %cst_43 [1] : vector<8x256xf32> to vector<8xf32>
    %137 = vector.shape_cast %136 : vector<8xf32> to vector<8x1xf32>
    %138 = vector.broadcast %137 : vector<8x1xf32> to vector<8x256xf32>
    %139 = arith.subf %135, %138 : vector<8x256xf32>
    %cst_44 = arith.constant 6.2564826 : f32
    %140 = vector.broadcast %cst_44 : f32 to vector<8x256xf32>
    %141 = arith.mulf %139, %140 : vector<8x256xf32>
    %142 = math.exp2 %141 : vector<8x256xf32>
    %cst_45 = arith.constant dense<0.000000e+00> : vector<8xf32>
    %143 = vector.multi_reduction <add>, %142, %cst_45 [1] : vector<8x256xf32> to vector<8xf32>
    %144 = vector.shape_cast %143 : vector<8xf32> to vector<8x1xf32>
    %cst_46 = arith.constant 0.826330959 : f32
    %145 = vector.broadcast %cst_46 : f32 to vector<8x1xf32>
    %146 = arith.subf %145, %137 : vector<8x1xf32>
    %147 = math.log %144 : vector<8x1xf32>
    %cst_47 = arith.constant 0.230592042 : f32
    %148 = vector.broadcast %cst_47 : f32 to vector<8x1xf32>
    %149 = arith.mulf %148, %147 : vector<8x1xf32>
    %150 = arith.subf %146, %149 : vector<8x1xf32>
    %cst_48 = arith.constant 0.000000e+00 : f32
    %151 = vector.broadcast %cst_48 : f32 to vector<8x1xf32>
    %152 = arith.subf %151, %150 : vector<8x1xf32>
    %153 = vector.broadcast %152 : vector<8x1xf32> to vector<8x256xf32>
    %154 = arith.minimumf %0, %153 : vector<8x256xf32>
    %cst_49 = arith.constant dense<0xFF800000> : vector<8xf32>
    %155 = vector.multi_reduction <maximumf>, %154, %cst_49 [1] : vector<8x256xf32> to vector<8xf32>
    %156 = vector.shape_cast %155 : vector<8xf32> to vector<8x1xf32>
    %157 = vector.broadcast %156 : vector<8x1xf32> to vector<8x256xf32>
    %158 = arith.subf %154, %157 : vector<8x256xf32>
    %cst_50 = arith.constant 8.93783188 : f32
    %159 = vector.broadcast %cst_50 : f32 to vector<8x256xf32>
    %160 = arith.mulf %158, %159 : vector<8x256xf32>
    %161 = math.exp2 %160 : vector<8x256xf32>
    %cst_51 = arith.constant dense<0.000000e+00> : vector<8xf32>
    %162 = vector.multi_reduction <add>, %161, %cst_51 [1] : vector<8x256xf32> to vector<8xf32>
    %163 = vector.shape_cast %162 : vector<8xf32> to vector<8x1xf32>
    %cst_52 = arith.constant 0.578431666 : f32
    %164 = vector.broadcast %cst_52 : f32 to vector<8x1xf32>
    %165 = arith.subf %164, %156 : vector<8x1xf32>
    %166 = math.log %163 : vector<8x1xf32>
    %cst_53 = arith.constant 0.16141443 : f32
    %167 = vector.broadcast %cst_53 : f32 to vector<8x1xf32>
    %168 = arith.mulf %167, %166 : vector<8x1xf32>
    %169 = arith.subf %165, %168 : vector<8x1xf32>
    %cst_54 = arith.constant 0.000000e+00 : f32
    %170 = vector.broadcast %cst_54 : f32 to vector<8x1xf32>
    %171 = arith.subf %170, %169 : vector<8x1xf32>
    %172 = vector.broadcast %171 : vector<8x1xf32> to vector<8x256xf32>
    %173 = arith.minimumf %0, %172 : vector<8x256xf32>
    %cst_55 = arith.constant dense<0xFF800000> : vector<8xf32>
    %174 = vector.multi_reduction <maximumf>, %173, %cst_55 [1] : vector<8x256xf32> to vector<8xf32>
    %175 = vector.shape_cast %174 : vector<8xf32> to vector<8x1xf32>
    %176 = vector.broadcast %175 : vector<8x1xf32> to vector<8x256xf32>
    %177 = arith.subf %173, %176 : vector<8x256xf32>
    %cst_56 = arith.constant 12.7683315 : f32
    %178 = vector.broadcast %cst_56 : f32 to vector<8x256xf32>
    %179 = arith.mulf %177, %178 : vector<8x256xf32>
    %180 = math.exp2 %179 : vector<8x256xf32>
    %cst_57 = arith.constant dense<0.000000e+00> : vector<8xf32>
    %181 = vector.multi_reduction <add>, %180, %cst_57 [1] : vector<8x256xf32> to vector<8xf32>
    %182 = vector.shape_cast %181 : vector<8xf32> to vector<8x1xf32>
    %cst_58 = arith.constant 0.40490216 : f32
    %183 = vector.broadcast %cst_58 : f32 to vector<8x1xf32>
    %184 = arith.subf %183, %175 : vector<8x1xf32>
    %185 = math.log %182 : vector<8x1xf32>
    %cst_59 = arith.constant 0.112990096 : f32
    %186 = vector.broadcast %cst_59 : f32 to vector<8x1xf32>
    %187 = arith.mulf %186, %185 : vector<8x1xf32>
    %188 = arith.subf %184, %187 : vector<8x1xf32>
    %cst_60 = arith.constant 0.000000e+00 : f32
    %189 = vector.broadcast %cst_60 : f32 to vector<8x1xf32>
    %190 = arith.subf %189, %188 : vector<8x1xf32>
    %191 = vector.broadcast %190 : vector<8x1xf32> to vector<8x256xf32>
    %192 = arith.minimumf %0, %191 : vector<8x256xf32>
    %cst_61 = arith.constant dense<0xFF800000> : vector<8xf32>
    %193 = vector.multi_reduction <maximumf>, %192, %cst_61 [1] : vector<8x256xf32> to vector<8xf32>
    %194 = vector.shape_cast %193 : vector<8xf32> to vector<8x1xf32>
    %195 = vector.broadcast %194 : vector<8x1xf32> to vector<8x256xf32>
    %196 = arith.subf %192, %195 : vector<8x256xf32>
    %cst_62 = arith.constant 18.2404728 : f32
    %197 = vector.broadcast %cst_62 : f32 to vector<8x256xf32>
    %198 = arith.mulf %196, %197 : vector<8x256xf32>
    %199 = math.exp2 %198 : vector<8x256xf32>
    %cst_63 = arith.constant dense<0.000000e+00> : vector<8xf32>
    %200 = vector.multi_reduction <add>, %199, %cst_63 [1] : vector<8x256xf32> to vector<8xf32>
    %201 = vector.shape_cast %200 : vector<8xf32> to vector<8x1xf32>
    %cst_64 = arith.constant 0.2834315 : f32
    %202 = vector.broadcast %cst_64 : f32 to vector<8x1xf32>
    %203 = arith.subf %202, %194 : vector<8x1xf32>
    %204 = math.log %201 : vector<8x1xf32>
    %cst_65 = arith.constant 0.0790930688 : f32
    %205 = vector.broadcast %cst_65 : f32 to vector<8x1xf32>
    %206 = arith.mulf %205, %204 : vector<8x1xf32>
    %207 = arith.subf %203, %206 : vector<8x1xf32>
    %cst_66 = arith.constant 0.000000e+00 : f32
    %208 = vector.broadcast %cst_66 : f32 to vector<8x1xf32>
    %209 = arith.subf %208, %207 : vector<8x1xf32>
    %210 = vector.broadcast %209 : vector<8x1xf32> to vector<8x256xf32>
    %211 = arith.minimumf %0, %210 : vector<8x256xf32>
    %cst_67 = arith.constant dense<0xFF800000> : vector<8xf32>
    %212 = vector.multi_reduction <maximumf>, %211, %cst_67 [1] : vector<8x256xf32> to vector<8xf32>
    %213 = vector.shape_cast %212 : vector<8xf32> to vector<8x1xf32>
    %214 = vector.broadcast %213 : vector<8x1xf32> to vector<8x256xf32>
    %215 = arith.subf %211, %214 : vector<8x256xf32>
    %cst_68 = arith.constant 26.0578194 : f32
    %216 = vector.broadcast %cst_68 : f32 to vector<8x256xf32>
    %217 = arith.mulf %215, %216 : vector<8x256xf32>
    %218 = math.exp2 %217 : vector<8x256xf32>
    %cst_69 = arith.constant dense<0.000000e+00> : vector<8xf32>
    %219 = vector.multi_reduction <add>, %218, %cst_69 [1] : vector<8x256xf32> to vector<8xf32>
    %220 = vector.shape_cast %219 : vector<8xf32> to vector<8x1xf32>
    %cst_70 = arith.constant 0.198402062 : f32
    %221 = vector.broadcast %cst_70 : f32 to vector<8x1xf32>
    %222 = arith.subf %221, %213 : vector<8x1xf32>
    %223 = math.log %220 : vector<8x1xf32>
    %cst_71 = arith.constant 0.0553651489 : f32
    %224 = vector.broadcast %cst_71 : f32 to vector<8x1xf32>
    %225 = arith.mulf %224, %223 : vector<8x1xf32>
    %226 = arith.subf %222, %225 : vector<8x1xf32>
    %cst_72 = arith.constant 0.000000e+00 : f32
    %227 = vector.broadcast %cst_72 : f32 to vector<8x1xf32>
    %228 = arith.subf %227, %226 : vector<8x1xf32>
    %229 = vector.broadcast %228 : vector<8x1xf32> to vector<8x256xf32>
    %230 = arith.minimumf %0, %229 : vector<8x256xf32>
    %cst_73 = arith.constant dense<0xFF800000> : vector<8xf32>
    %231 = vector.multi_reduction <maximumf>, %230, %cst_73 [1] : vector<8x256xf32> to vector<8xf32>
    %232 = vector.shape_cast %231 : vector<8xf32> to vector<8x1xf32>
    %233 = vector.broadcast %232 : vector<8x1xf32> to vector<8x256xf32>
    %234 = arith.subf %230, %233 : vector<8x256xf32>
    %cst_74 = arith.constant 37.2254562 : f32
    %235 = vector.broadcast %cst_74 : f32 to vector<8x256xf32>
    %236 = arith.mulf %234, %235 : vector<8x256xf32>
    %237 = math.exp2 %236 : vector<8x256xf32>
    %cst_75 = arith.constant dense<0.000000e+00> : vector<8xf32>
    %238 = vector.multi_reduction <add>, %237, %cst_75 [1] : vector<8x256xf32> to vector<8xf32>
    %239 = vector.shape_cast %238 : vector<8xf32> to vector<8x1xf32>
    %cst_76 = arith.constant 0.138881445 : f32
    %240 = vector.broadcast %cst_76 : f32 to vector<8x1xf32>
    %241 = arith.subf %240, %232 : vector<8x1xf32>
    %242 = math.log %239 : vector<8x1xf32>
    %cst_77 = arith.constant 0.0387556031 : f32
    %243 = vector.broadcast %cst_77 : f32 to vector<8x1xf32>
    %244 = arith.mulf %243, %242 : vector<8x1xf32>
    %245 = arith.subf %241, %244 : vector<8x1xf32>
    %cst_78 = arith.constant 48.0898361 : f32
    %246 = vector.broadcast %cst_78 : f32 to vector<8x256xf32>
    %247 = arith.mulf %0, %246 : vector<8x256xf32>
    %cst_79 = arith.constant -48.0898361 : f32
    %248 = vector.broadcast %cst_79 : f32 to vector<8x1xf32>
    %249 = arith.mulf %245, %248 : vector<8x1xf32>
    %250 = vector.broadcast %249 : vector<8x1xf32> to vector<8x256xf32>
    %251 = arith.minimumf %247, %250 : vector<8x256xf32>
    %cst_80 = arith.constant dense<0xFF800000> : vector<8xf32>
    %252 = vector.multi_reduction <maximumf>, %251, %cst_80 [1] : vector<8x256xf32> to vector<8xf32>
    %253 = vector.shape_cast %252 : vector<8xf32> to vector<8x1xf32>
    %254 = vector.broadcast %253 : vector<8x1xf32> to vector<8x256xf32>
    %255 = arith.subf %251, %254 : vector<8x256xf32>
    %256 = math.exp2 %255 : vector<8x256xf32>
    %cst_81 = arith.constant dense<0.000000e+00> : vector<8xf32>
    %257 = vector.multi_reduction <add>, %256, %cst_81 [1] : vector<8x256xf32> to vector<8xf32>
    %258 = vector.shape_cast %257 : vector<8xf32> to vector<8x1xf32>
    %cst_82 = arith.constant 0.0207944158 : f32
    %259 = vector.broadcast %cst_82 : f32 to vector<8x1xf32>
    %260 = arith.mulf %253, %259 : vector<8x1xf32>
    %cst_83 = arith.constant 0.107505567 : f32
    %261 = vector.broadcast %cst_83 : f32 to vector<8x1xf32>
    %262 = arith.subf %261, %260 : vector<8x1xf32>
    %263 = math.log %258 : vector<8x1xf32>
    %cst_84 = arith.constant 3.000000e-02 : f32
    %264 = vector.broadcast %cst_84 : f32 to vector<8x1xf32>
    %265 = arith.mulf %264, %263 : vector<8x1xf32>
    %266 = arith.subf %262, %265 : vector<8x1xf32>
    %cst_85 = arith.constant -48.0898361 : f32
    %267 = vector.broadcast %cst_85 : f32 to vector<8x1xf32>
    %268 = arith.mulf %266, %267 : vector<8x1xf32>
    %269 = vector.broadcast %268 : vector<8x1xf32> to vector<8x256xf32>
    %270 = arith.minimumf %247, %269 : vector<8x256xf32>
    %cst_86 = arith.constant dense<0xFF800000> : vector<8xf32>
    %271 = vector.multi_reduction <maximumf>, %270, %cst_86 [1] : vector<8x256xf32> to vector<8xf32>
    %272 = vector.shape_cast %271 : vector<8xf32> to vector<8x1xf32>
    %273 = vector.broadcast %272 : vector<8x1xf32> to vector<8x256xf32>
    %274 = arith.subf %270, %273 : vector<8x256xf32>
    %275 = math.exp2 %274 : vector<8x256xf32>
    %cst_87 = arith.constant dense<0.000000e+00> : vector<8xf32>
    %276 = vector.multi_reduction <add>, %275, %cst_87 [1] : vector<8x256xf32> to vector<8xf32>
    %277 = vector.shape_cast %276 : vector<8xf32> to vector<8x1xf32>
    %cst_88 = arith.constant 0.0207944158 : f32
    %278 = vector.broadcast %cst_88 : f32 to vector<8x1xf32>
    %279 = arith.mulf %272, %278 : vector<8x1xf32>
    %cst_89 = arith.constant 0.107505567 : f32
    %280 = vector.broadcast %cst_89 : f32 to vector<8x1xf32>
    %281 = arith.subf %280, %279 : vector<8x1xf32>
    %282 = math.log %277 : vector<8x1xf32>
    %cst_90 = arith.constant 3.000000e-02 : f32
    %283 = vector.broadcast %cst_90 : f32 to vector<8x1xf32>
    %284 = arith.mulf %283, %282 : vector<8x1xf32>
    %285 = arith.subf %281, %284 : vector<8x1xf32>
    %cst_91 = arith.constant -48.0898361 : f32
    %286 = vector.broadcast %cst_91 : f32 to vector<8x1xf32>
    %287 = arith.mulf %285, %286 : vector<8x1xf32>
    %288 = vector.broadcast %287 : vector<8x1xf32> to vector<8x256xf32>
    %289 = arith.minimumf %247, %288 : vector<8x256xf32>
    %cst_92 = arith.constant dense<0xFF800000> : vector<8xf32>
    %290 = vector.multi_reduction <maximumf>, %289, %cst_92 [1] : vector<8x256xf32> to vector<8xf32>
    %291 = vector.shape_cast %290 : vector<8xf32> to vector<8x1xf32>
    %292 = vector.broadcast %291 : vector<8x1xf32> to vector<8x256xf32>
    %293 = arith.subf %289, %292 : vector<8x256xf32>
    %294 = math.exp2 %293 : vector<8x256xf32>
    %cst_93 = arith.constant dense<0.000000e+00> : vector<8xf32>
    %295 = vector.multi_reduction <add>, %294, %cst_93 [1] : vector<8x256xf32> to vector<8xf32>
    %296 = vector.shape_cast %295 : vector<8xf32> to vector<8x1xf32>
    %cst_94 = arith.constant 0.0207944158 : f32
    %297 = vector.broadcast %cst_94 : f32 to vector<8x1xf32>
    %298 = arith.mulf %291, %297 : vector<8x1xf32>
    %cst_95 = arith.constant 0.107505567 : f32
    %299 = vector.broadcast %cst_95 : f32 to vector<8x1xf32>
    %300 = arith.subf %299, %298 : vector<8x1xf32>
    %301 = math.log %296 : vector<8x1xf32>
    %cst_96 = arith.constant 3.000000e-02 : f32
    %302 = vector.broadcast %cst_96 : f32 to vector<8x1xf32>
    %303 = arith.mulf %302, %301 : vector<8x1xf32>
    %304 = arith.subf %300, %303 : vector<8x1xf32>
    %cst_97 = arith.constant -48.0898361 : f32
    %305 = vector.broadcast %cst_97 : f32 to vector<8x1xf32>
    %306 = arith.mulf %304, %305 : vector<8x1xf32>
    %307 = vector.broadcast %306 : vector<8x1xf32> to vector<8x256xf32>
    %308 = arith.minimumf %247, %307 : vector<8x256xf32>
    %cst_98 = arith.constant dense<0xFF800000> : vector<8xf32>
    %309 = vector.multi_reduction <maximumf>, %308, %cst_98 [1] : vector<8x256xf32> to vector<8xf32>
    %310 = vector.shape_cast %309 : vector<8xf32> to vector<8x1xf32>
    %311 = vector.broadcast %310 : vector<8x1xf32> to vector<8x256xf32>
    %312 = arith.subf %308, %311 : vector<8x256xf32>
    %313 = math.exp2 %312 : vector<8x256xf32>
    %cst_99 = arith.constant dense<0.000000e+00> : vector<8xf32>
    %314 = vector.multi_reduction <add>, %313, %cst_99 [1] : vector<8x256xf32> to vector<8xf32>
    %315 = vector.shape_cast %314 : vector<8xf32> to vector<8x1xf32>
    %cst_100 = arith.constant 0.0207944158 : f32
    %316 = vector.broadcast %cst_100 : f32 to vector<8x1xf32>
    %317 = arith.mulf %310, %316 : vector<8x1xf32>
    %cst_101 = arith.constant 0.107505567 : f32
    %318 = vector.broadcast %cst_101 : f32 to vector<8x1xf32>
    %319 = arith.subf %318, %317 : vector<8x1xf32>
    %320 = math.log %315 : vector<8x1xf32>
    %cst_102 = arith.constant 3.000000e-02 : f32
    %321 = vector.broadcast %cst_102 : f32 to vector<8x1xf32>
    %322 = arith.mulf %321, %320 : vector<8x1xf32>
    %323 = arith.subf %319, %322 : vector<8x1xf32>
    %cst_103 = arith.constant -48.0898361 : f32
    %324 = vector.broadcast %cst_103 : f32 to vector<8x1xf32>
    %325 = arith.mulf %323, %324 : vector<8x1xf32>
    %326 = vector.broadcast %325 : vector<8x1xf32> to vector<8x256xf32>
    %327 = arith.minimumf %247, %326 : vector<8x256xf32>
    %cst_104 = arith.constant dense<0xFF800000> : vector<8xf32>
    %328 = vector.multi_reduction <maximumf>, %327, %cst_104 [1] : vector<8x256xf32> to vector<8xf32>
    %329 = vector.shape_cast %328 : vector<8xf32> to vector<8x1xf32>
    %330 = vector.broadcast %329 : vector<8x1xf32> to vector<8x256xf32>
    %331 = arith.subf %327, %330 : vector<8x256xf32>
    %332 = math.exp2 %331 : vector<8x256xf32>
    %cst_105 = arith.constant dense<0.000000e+00> : vector<8xf32>
    %333 = vector.multi_reduction <add>, %332, %cst_105 [1] : vector<8x256xf32> to vector<8xf32>
    %334 = vector.shape_cast %333 : vector<8xf32> to vector<8x1xf32>
    %cst_106 = arith.constant 0.0207944158 : f32
    %335 = vector.broadcast %cst_106 : f32 to vector<8x1xf32>
    %336 = arith.mulf %329, %335 : vector<8x1xf32>
    %cst_107 = arith.constant 0.107505567 : f32
    %337 = vector.broadcast %cst_107 : f32 to vector<8x1xf32>
    %338 = arith.subf %337, %336 : vector<8x1xf32>
    %339 = math.log %334 : vector<8x1xf32>
    %cst_108 = arith.constant 3.000000e-02 : f32
    %340 = vector.broadcast %cst_108 : f32 to vector<8x1xf32>
    %341 = arith.mulf %340, %339 : vector<8x1xf32>
    %342 = arith.subf %338, %341 : vector<8x1xf32>
    %cst_109 = arith.constant -48.0898361 : f32
    %343 = vector.broadcast %cst_109 : f32 to vector<8x1xf32>
    %344 = arith.mulf %342, %343 : vector<8x1xf32>
    %345 = vector.broadcast %344 : vector<8x1xf32> to vector<8x256xf32>
    %346 = arith.minimumf %247, %345 : vector<8x256xf32>
    %cst_110 = arith.constant dense<0xFF800000> : vector<8xf32>
    %347 = vector.multi_reduction <maximumf>, %346, %cst_110 [1] : vector<8x256xf32> to vector<8xf32>
    %348 = vector.shape_cast %347 : vector<8xf32> to vector<8x1xf32>
    %349 = vector.broadcast %348 : vector<8x1xf32> to vector<8x256xf32>
    %350 = arith.subf %346, %349 : vector<8x256xf32>
    %351 = math.exp2 %350 : vector<8x256xf32>
    %cst_111 = arith.constant dense<0.000000e+00> : vector<8xf32>
    %352 = vector.multi_reduction <add>, %351, %cst_111 [1] : vector<8x256xf32> to vector<8xf32>
    %353 = vector.shape_cast %352 : vector<8xf32> to vector<8x1xf32>
    %cst_112 = arith.constant 0.0207944158 : f32
    %354 = vector.broadcast %cst_112 : f32 to vector<8x1xf32>
    %355 = arith.mulf %348, %354 : vector<8x1xf32>
    %cst_113 = arith.constant 0.107505567 : f32
    %356 = vector.broadcast %cst_113 : f32 to vector<8x1xf32>
    %357 = arith.subf %356, %355 : vector<8x1xf32>
    %358 = math.log %353 : vector<8x1xf32>
    %cst_114 = arith.constant 3.000000e-02 : f32
    %359 = vector.broadcast %cst_114 : f32 to vector<8x1xf32>
    %360 = arith.mulf %359, %358 : vector<8x1xf32>
    %361 = arith.subf %357, %360 : vector<8x1xf32>
    %cst_115 = arith.constant 48.0898361 : f32
    %362 = vector.broadcast %cst_115 : f32 to vector<8x1xf32>
    %363 = arith.mulf %361, %362 : vector<8x1xf32>
    %364 = vector.broadcast %363 : vector<8x1xf32> to vector<8x256xf32>
    %365 = arith.addf %247, %364 : vector<8x256xf32>
    %cst_116 = arith.constant 0.000000e+00 : f32
    %366 = vector.broadcast %cst_116 : f32 to vector<8x256xf32>
    %367 = arith.minimumf %365, %366 : vector<8x256xf32>
    %368 = math.exp2 %367 : vector<8x256xf32>
    %c0_117 = arith.constant 0 : index
    %c0_118 = arith.constant 0 : index
    %369 = vector.load %arg2[%c0_117, %c0_118] : memref<8x256xf32, #tpu.memory_space<vmem>>, vector<8x256xf32>
    tpu.vector_store %arg2[%c0_117, %c0_118], %368 {strides = array<i32>} : memref<8x256xf32, #tpu.memory_space<vmem>>, vector<8x256xf32>,
    return
  }
  func.func @transform_0(%arg0: i32) -> (i32, i32) {
    %c0_i32 = arith.constant 0 : i32
    %c0_i32_0 = arith.constant 0 : i32
    return %arg0, %c0_i32 : i32, i32
  }
  func.func @transform_1(%arg0: i32) -> (i32, i32) {
    %c0_i32 = arith.constant 0 : i32
    %c0_i32_0 = arith.constant 0 : i32
    return %arg0, %c0_i32 : i32, i32
  }
}

</mosaic_0001>

<llo_original>
// kernel: tpu_custom_call.1
$region0: #{tpu_custom_call.1}
  #allocation0 [shape = 'u32[]', space=smem, size = 0x4, offset = 0x4, fixed_abs, tag = 'smem constant byte address 0x4 - core index']
  #allocation1 [shape = 'u32[72,128]{1,0:T(1,128)}', space=vmem, size = 0x9000, scoped, tag = 'internal scratch']
  %s0 = inlined_call_operand.hbm [shape: f32[2,256], index: 0, kind: input, shape index: {}]
  %s1 = inlined_call_operand.hbm [shape: f32[2,256], index: 1, kind: output, shape index: {}]
  %s2 = sld [smem:[#allocation0]]
  $region18: #{tpu_custom_call.1} parent=0
    _
  %s4 = ssub.s32 1, %s2
  %s5 = scalar_select 0, %s4, %s2
  $region1: #{tpu_custom_call.1} parent=0
    #allocation2 [shape = 'u8[8192]{0}', space=vmem, size = 0x2000, scoped, tag = 'input window, operand 0, single buffered']
    #allocation3 [shape = 's32[1]{0}', space=sflag, size = 0x4, scoped, tag = 'scoped memory for tpu_custom_call.1']
    #allocation4 [shape = 's32[1]{0}', space=sflag, size = 0x4, scoped, tag = 'scoped memory for tpu_custom_call.1']
    #allocation5 [shape = 'u8[8192]{0}', space=vmem, size = 0x2000, scoped, tag = 'output window, operand 0, single buffered']
    %6 = vsyncpa [#allocation3], 0
    %7 = vsyncpa [#allocation4], 0
    // Predicated region
    $region2: #{tpu_custom_call.1} parent=1 // pred_check
      _
    $region3: #{tpu_custom_call.1} parent=1 // pred_check_branch
      %9 = sbr.rel (0) target = $region5
    $region4: #{tpu_custom_call.1} parent=1 // pred_region
      %11 = vsyncadd [#allocation3], 192
      %s12 = sshll.u32 %s0, 4
      %s13 = int_to_ptr.hbm [resolvable:$true] %s12
      %s14 = sshll.u32 [#allocation2], 4
      %s15 = int_to_ptr.vmem [resolvable:$true] %s14
      %20 = dma.hbm_to_vmem [thread:$0]  %s13, 64, %s15, [#allocation3], 64, 64, 4
    $region5: #{tpu_custom_call.1} parent=1 // pred_fallthru
      _
    // Predicated region
    $region6: #{tpu_custom_call.1} parent=1 // pred_check
      _
    $region7: #{tpu_custom_call.1} parent=1 // pred_check_branch
      %22 = sbr.rel (0) target = $region9
    $region8: #{tpu_custom_call.1} parent=1 // pred_region
      %24 = dma.done [#allocation3], 256
    $region9: #{tpu_custom_call.1} parent=1 // pred_fallthru
      _
    %v25 = vld [vmem:[#allocation2] sm:$0xf]
    %v26 = vld [vmem:[#allocation2 + $0x4] sm:$0xf]
    %v27 = vld [vmem:[#allocation2 + $0x8] sm:$0xf]
    %v28 = vld [vmem:[#allocation2 + $0xc] sm:$0xf]
    %v29 = vmin.f32 %v25, 7.846634
    %v30 = vmin.f32 %v26, 7.846634
    %v31 = vmin.f32 %v27, 7.846634
    %v32 = vmin.f32 %v28, 7.846634
    %37 = vst [vmem:[#allocation1] ss:$4 sm:$0xff] %v29
    %s38 = scalar_lea.vmem [#allocation1], 1
    %39 = vst [vmem:[%s38] ss:$4 sm:$0xff] %v30
    %s40 = scalar_lea.vmem [#allocation1], 2
    %41 = vst [vmem:[%s40] ss:$4 sm:$0xff] %v31
    %s42 = scalar_lea.vmem [#allocation1], 3
    %43 = vst [vmem:[%s42] ss:$4 sm:$0xff] %v32
    %v44 = vld.sshfl [vmem:[#allocation1] sm:$0xff pattern:$0x73625140]
    %v45 = vld.sshfl [vmem:[#allocation1 + $0x8] sm:$0xff pattern:$0x73625140]
    %v48 = vmax.f32 %v44, %v45
    %49 = vmax.xlane.f32.xlu0 %v48
    %v50 = vpop.xlane.xlu0 %49
    %v53 = vunpack.c.l.s4 269488144
    %v54 = vunpack.c.0.s8 %v53
    %v55 = vperm.slane %v50, %v54
    %v57 = vunpack.c.l.s4 842150450
    %v58 = vunpack.c.0.s8 %v57
    %v59 = vperm.slane %v50, %v58
    %v61 = vunpack.c.l.s4 1414812756
    %v62 = vunpack.c.0.s8 %v61
    %v63 = vperm.slane %v50, %v62
    %v65 = vunpack.c.l.s4 1987475062
    %v66 = vunpack.c.0.s8 %v65
    %v67 = vperm.slane %v50, %v66
    %v72 = vsub.f32 %v29, %v55
    %v73 = vsub.f32 %v30, %v59
    %v74 = vsub.f32 %v31, %v63
    %v75 = vsub.f32 %v32, %v67
    %v76 = vmul.f32 %v72, 0.51524824
    %v77 = vmul.f32 %v73, 0.51524824
    %v78 = vmul.f32 %v74, 0.51524824
    %v79 = vmul.f32 %v75, 0.51524824
    %v80 = vpow.pop %v76
    %v81 = vpow.pop %v77
    %v82 = vpow.pop %v78
    %v83 = vpow.pop %v79
    %88 = vst [vmem:[#allocation1] ss:$4 sm:$0xff] %v80
    %s89 = scalar_lea.vmem [#allocation1], 1
    %90 = vst [vmem:[%s89] ss:$4 sm:$0xff] %v81
    %s91 = scalar_lea.vmem [#allocation1], 2
    %92 = vst [vmem:[%s91] ss:$4 sm:$0xff] %v82
    %s93 = scalar_lea.vmem [#allocation1], 3
    %94 = vst [vmem:[%s93] ss:$4 sm:$0xff] %v83
    %v95 = vld.sshfl [vmem:[#allocation1] sm:$0xff pattern:$0x73625140]
    %v96 = vld.sshfl [vmem:[#allocation1 + $0x8] sm:$0xff pattern:$0x73625140]
    %v99 = vadd.f32 %v95, %v96
    %100 = vadd.xlane.f32.xlu0 %v99
    %v101 = vpop.xlane.xlu0 %100
    %v102 = vsub.f32 10.033853, %v50
    %v103 = vlog2.pop %v101
    %v104 = vmul.f32 %v103, 0.6931472
    %v105 = vmul.f32 %v104, 2.8
    %v106 = vsub.f32 %v102, %v105
    %v107 = vsub.f32 0.0, %v106
    %v110 = vunpack.c.l.s4 269488144
    %v111 = vunpack.c.0.s8 %v110
    %v112 = vperm.slane %v107, %v111
    %v114 = vunpack.c.l.s4 842150450
    %v115 = vunpack.c.0.s8 %v114
    %v116 = vperm.slane %v107, %v115
    %v118 = vunpack.c.l.s4 1414812756
    %v119 = vunpack.c.0.s8 %v118
    %v120 = vperm.slane %v107, %v119
    %v122 = vunpack.c.l.s4 1987475062
    %v123 = vunpack.c.0.s8 %v122
    %v124 = vperm.slane %v107, %v123
    %v129 = vmin.f32 %v25, %v112
    %v130 = vmin.f32 %v26, %v116
    %v131 = vmin.f32 %v27, %v120
    %v132 = vmin.f32 %v28, %v124
    %137 = vst [vmem:[#allocation1] ss:$4 sm:$0xff] %v129
    %s138 = scalar_lea.vmem [#allocation1], 1
    %139 = vst [vmem:[%s138] ss:$4 sm:$0xff] %v130
    %s140 = scalar_lea.vmem [#allocation1], 2
    %141 = vst [vmem:[%s140] ss:$4 sm:$0xff] %v131
    %s142 = scalar_lea.vmem [#allocation1], 3
    %143 = vst [vmem:[%s142] ss:$4 sm:$0xff] %v132
    %v144 = vld.sshfl [vmem:[#allocation1] sm:$0xff pattern:$0x73625140]
    %v145 = vld.sshfl [vmem:[#allocation1 + $0x8] sm:$0xff pattern:$0x73625140]
    %v148 = vmax.f32 %v144, %v145
    %149 = vmax.xlane.f32.xlu0 %v148
    %v150 = vpop.xlane.xlu0 %149
    %v153 = vunpack.c.l.s4 269488144
    %v154 = vunpack.c.0.s8 %v153
    %v155 = vperm.slane %v150, %v154
    %v157 = vunpack.c.l.s4 842150450
    %v158 = vunpack.c.0.s8 %v157
    %v159 = vperm.slane %v150, %v158
    %v161 = vunpack.c.l.s4 1414812756
    %v162 = vunpack.c.0.s8 %v161
    %v163 = vperm.slane %v150, %v162
    %v165 = vunpack.c.l.s4 1987475062
    %v166 = vunpack.c.0.s8 %v165
    %v167 = vperm.slane %v150, %v166
    %v172 = vsub.f32 %v129, %v155
    %v173 = vsub.f32 %v130, %v159
    %v174 = vsub.f32 %v131, %v163
    %v175 = vsub.f32 %v132, %v167
    %v176 = vmul.f32 %v172, 0.7360689
    %v177 = vmul.f32 %v173, 0.7360689
    %v178 = vmul.f32 %v174, 0.7360689
    %v179 = vmul.f32 %v175, 0.7360689
    %v180 = vpow.pop %v176
    %v181 = vpow.pop %v177
    %v182 = vpow.pop %v178
    %v183 = vpow.pop %v179
    %188 = vst [vmem:[#allocation1] ss:$4 sm:$0xff] %v180
    %s189 = scalar_lea.vmem [#allocation1], 1
    %190 = vst [vmem:[%s189] ss:$4 sm:$0xff] %v181
    %s191 = scalar_lea.vmem [#allocation1], 2
    %192 = vst [vmem:[%s191] ss:$4 sm:$0xff] %v182
    %s193 = scalar_lea.vmem [#allocation1], 3
    %194 = vst [vmem:[%s193] ss:$4 sm:$0xff] %v183
    %v195 = vld.sshfl [vmem:[#allocation1] sm:$0xff pattern:$0x73625140]
    %v196 = vld.sshfl [vmem:[#allocation1 + $0x8] sm:$0xff pattern:$0x73625140]
    %v199 = vadd.f32 %v195, %v196
    %200 = vadd.xlane.f32.xlu0 %v199
    %v201 = vpop.xlane.xlu0 %200
    %v202 = vsub.f32 7.023697, %v150
    %v203 = vlog2.pop %v201
    %v204 = vmul.f32 %v203, 0.6931472
    %v205 = vmul.f32 %v204, 1.96
    %v206 = vsub.f32 %v202, %v205
    %v207 = vsub.f32 0.0, %v206
    %v210 = vunpack.c.l.s4 269488144
    %v211 = vunpack.c.0.s8 %v210
    %v212 = vperm.slane %v207, %v211
    %v214 = vunpack.c.l.s4 842150450
    %v215 = vunpack.c.0.s8 %v214
    %v216 = vperm.slane %v207, %v215
    %v218 = vunpack.c.l.s4 1414812756
    %v219 = vunpack.c.0.s8 %v218
    %v220 = vperm.slane %v207, %v219
    %v222 = vunpack.c.l.s4 1987475062
    %v223 = vunpack.c.0.s8 %v222
    %v224 = vperm.slane %v207, %v223
    %v229 = vmin.f32 %v25, %v212
    %v230 = vmin.f32 %v26, %v216
    %v231 = vmin.f32 %v27, %v220
    %v232 = vmin.f32 %v28, %v224
    %237 = vst [vmem:[#allocation1] ss:$4 sm:$0xff] %v229
    %s238 = scalar_lea.vmem [#allocation1], 1
    %239 = vst [vmem:[%s238] ss:$4 sm:$0xff] %v230
    %s240 = scalar_lea.vmem [#allocation1], 2
    %241 = vst [vmem:[%s240] ss:$4 sm:$0xff] %v231
    %s242 = scalar_lea.vmem [#allocation1], 3
    %243 = vst [vmem:[%s242] ss:$4 sm:$0xff] %v232
    %v244 = vld.sshfl [vmem:[#allocation1] sm:$0xff pattern:$0x73625140]
    %v245 = vld.sshfl [vmem:[#allocation1 + $0x8] sm:$0xff pattern:$0x73625140]
    %v248 = vmax.f32 %v244, %v245
    %249 = vmax.xlane.f32.xlu0 %v248
    %v250 = vpop.xlane.xlu0 %249
    %v253 = vunpack.c.l.s4 269488144
    %v254 = vunpack.c.0.s8 %v253
    %v255 = vperm.slane %v250, %v254
    %v257 = vunpack.c.l.s4 842150450
    %v258 = vunpack.c.0.s8 %v257
    %v259 = vperm.slane %v250, %v258
    %v261 = vunpack.c.l.s4 1414812756
    %v262 = vunpack.c.0.s8 %v261
    %v263 = vperm.slane %v250, %v262
    %v265 = vunpack.c.l.s4 1987475062
    %v266 = vunpack.c.0.s8 %v265
    %v267 = vperm.slane %v250, %v266
    %v272 = vsub.f32 %v229, %v255
    %v273 = vsub.f32 %v230, %v259
    %v274 = vsub.f32 %v231, %v263
    %v275 = vsub.f32 %v232, %v267
    %v276 = vmul.f32 %v272, 1.051527
    %v277 = vmul.f32 %v273, 1.051527
    %v278 = vmul.f32 %v274, 1.051527
    %v279 = vmul.f32 %v275, 1.051527
    %v280 = vpow.pop %v276
    %v281 = vpow.pop %v277
    %v282 = vpow.pop %v278
    %v283 = vpow.pop %v279
    %288 = vst [vmem:[#allocation1] ss:$4 sm:$0xff] %v280
    %s289 = scalar_lea.vmem [#allocation1], 1
    %290 = vst [vmem:[%s289] ss:$4 sm:$0xff] %v281
    %s291 = scalar_lea.vmem [#allocation1], 2
    %292 = vst [vmem:[%s291] ss:$4 sm:$0xff] %v282
    %s293 = scalar_lea.vmem [#allocation1], 3
    %294 = vst [vmem:[%s293] ss:$4 sm:$0xff] %v283
    %v295 = vld.sshfl [vmem:[#allocation1] sm:$0xff pattern:$0x73625140]
    %v296 = vld.sshfl [vmem:[#allocation1 + $0x8] sm:$0xff pattern:$0x73625140]
    %v299 = vadd.f32 %v295, %v296
    %300 = vadd.xlane.f32.xlu0 %v299
    %v301 = vpop.xlane.xlu0 %300
    %v302 = vsub.f32 4.916588, %v250
    %v303 = vlog2.pop %v301
    %v304 = vmul.f32 %v303, 0.6931472
    %v305 = vmul.f32 %v304, 1.372
    %v306 = vsub.f32 %v302, %v305
    %v307 = vsub.f32 0.0, %v306
    %v310 = vunpack.c.l.s4 269488144
    %v311 = vunpack.c.0.s8 %v310
    %v312 = vperm.slane %v307, %v311
    %v314 = vunpack.c.l.s4 842150450
    %v315 = vunpack.c.0.s8 %v314
    %v316 = vperm.slane %v307, %v315
    %v318 = vunpack.c.l.s4 1414812756
    %v319 = vunpack.c.0.s8 %v318
    %v320 = vperm.slane %v307, %v319
    %v322 = vunpack.c.l.s4 1987475062
    %v323 = vunpack.c.0.s8 %v322
    %v324 = vperm.slane %v307, %v323
    %v329 = vmin.f32 %v25, %v312
    %v330 = vmin.f32 %v26, %v316
    %v331 = vmin.f32 %v27, %v320
    %v332 = vmin.f32 %v28, %v324
    %337 = vst [vmem:[#allocation1] ss:$4 sm:$0xff] %v329
    %s338 = scalar_lea.vmem [#allocation1], 1
    %339 = vst [vmem:[%s338] ss:$4 sm:$0xff] %v330
    %s340 = scalar_lea.vmem [#allocation1], 2
    %341 = vst [vmem:[%s340] ss:$4 sm:$0xff] %v331
    %s342 = scalar_lea.vmem [#allocation1], 3
    %343 = vst [vmem:[%s342] ss:$4 sm:$0xff] %v332
    %v344 = vld.sshfl [vmem:[#allocation1] sm:$0xff pattern:$0x73625140]
    %v345 = vld.sshfl [vmem:[#allocation1 + $0x8] sm:$0xff pattern:$0x73625140]
    %v348 = vmax.f32 %v344, %v345
    %349 = vmax.xlane.f32.xlu0 %v348
    %v350 = vpop.xlane.xlu0 %349
    %v353 = vunpack.c.l.s4 269488144
    %v354 = vunpack.c.0.s8 %v353
    %v355 = vperm.slane %v350, %v354
    %v357 = vunpack.c.l.s4 842150450
    %v358 = vunpack.c.0.s8 %v357
    %v359 = vperm.slane %v350, %v358
    %v361 = vunpack.c.l.s4 1414812756
    %v362 = vunpack.c.0.s8 %v361
    %v363 = vperm.slane %v350, %v362
    %v365 = vunpack.c.l.s4 1987475062
    %v366 = vunpack.c.0.s8 %v365
    %v367 = vperm.slane %v350, %v366
    %v372 = vsub.f32 %v329, %v355
    %v373 = vsub.f32 %v330, %v359
    %v374 = vsub.f32 %v331, %v363
    %v375 = vsub.f32 %v332, %v367
    %v376 = vmul.f32 %v372, 1.5021814
    %v377 = vmul.f32 %v373, 1.5021814
    %v378 = vmul.f32 %v374, 1.5021814
    %v379 = vmul.f32 %v375, 1.5021814
    %v380 = vpow.pop %v376
    %v381 = vpow.pop %v377
    %v382 = vpow.pop %v378
    %v383 = vpow.pop %v379
    %388 = vst [vmem:[#allocation1] ss:$4 sm:$0xff] %v380
    %s389 = scalar_lea.vmem [#allocation1], 1
    %390 = vst [vmem:[%s389] ss:$4 sm:$0xff] %v381
    %s391 = scalar_lea.vmem [#allocation1], 2
    %392 = vst [vmem:[%s391] ss:$4 sm:$0xff] %v382
    %s393 = scalar_lea.vmem [#allocation1], 3
    %394 = vst [vmem:[%s393] ss:$4 sm:$0xff] %v383
    %v395 = vld.sshfl [vmem:[#allocation1] sm:$0xff pattern:$0x73625140]
    %v396 = vld.sshfl [vmem:[#allocation1 + $0x8] sm:$0xff pattern:$0x73625140]
    %v399 = vadd.f32 %v395, %v396
    %400 = vadd.xlane.f32.xlu0 %v399
    %v401 = vpop.xlane.xlu0 %400
    %v402 = vsub.f32 3.4416115, %v350
    %v403 = vlog2.pop %v401
    %v404 = vmul.f32 %v403, 0.6931472
    %v405 = vmul.f32 %v404, 0.9604
    %v406 = vsub.f32 %v402, %v405
    %v407 = vsub.f32 0.0, %v406
    %v410 = vunpack.c.l.s4 269488144
    %v411 = vunpack.c.0.s8 %v410
    %v412 = vperm.slane %v407, %v411
    %v414 = vunpack.c.l.s4 842150450
    %v415 = vunpack.c.0.s8 %v414
    %v416 = vperm.slane %v407, %v415
    %v418 = vunpack.c.l.s4 1414812756
    %v419 = vunpack.c.0.s8 %v418
    %v420 = vperm.slane %v407, %v419
    %v422 = vunpack.c.l.s4 1987475062
    %v423 = vunpack.c.0.s8 %v422
    %v424 = vperm.slane %v407, %v423
    %v429 = vmin.f32 %v25, %v412
    %v430 = vmin.f32 %v26, %v416
    %v431 = vmin.f32 %v27, %v420
    %v432 = vmin.f32 %v28, %v424
    %437 = vst [vmem:[#allocation1] ss:$4 sm:$0xff] %v429
    %s438 = scalar_lea.vmem [#allocation1], 1
    %439 = vst [vmem:[%s438] ss:$4 sm:$0xff] %v430
    %s440 = scalar_lea.vmem [#allocation1], 2
    %441 = vst [vmem:[%s440] ss:$4 sm:$0xff] %v431
    %s442 = scalar_lea.vmem [#allocation1], 3
    %443 = vst [vmem:[%s442] ss:$4 sm:$0xff] %v432
    %v444 = vld.sshfl [vmem:[#allocation1] sm:$0xff pattern:$0x73625140]
    %v445 = vld.sshfl [vmem:[#allocation1 + $0x8] sm:$0xff pattern:$0x73625140]
    %v448 = vmax.f32 %v444, %v445
    %449 = vmax.xlane.f32.xlu0 %v448
    %v450 = vpop.xlane.xlu0 %449
    %v453 = vunpack.c.l.s4 269488144
    %v454 = vunpack.c.0.s8 %v453
    %v455 = vperm.slane %v450, %v454
    %v457 = vunpack.c.l.s4 842150450
    %v458 = vunpack.c.0.s8 %v457
    %v459 = vperm.slane %v450, %v458
    %v461 = vunpack.c.l.s4 1414812756
    %v462 = vunpack.c.0.s8 %v461
    %v463 = vperm.slane %v450, %v462
    %v465 = vunpack.c.l.s4 1987475062
    %v466 = vunpack.c.0.s8 %v465
    %v467 = vperm.slane %v450, %v466
    %v472 = vsub.f32 %v429, %v455
    %v473 = vsub.f32 %v430, %v459
    %v474 = vsub.f32 %v431, %v463
    %v475 = vsub.f32 %v432, %v467
    %v476 = vmul.f32 %v472, 2.1459734
    %v477 = vmul.f32 %v473, 2.1459734
    %v478 = vmul.f32 %v474, 2.1459734
    %v479 = vmul.f32 %v475, 2.1459734
    %v480 = vpow.pop %v476
    %v481 = vpow.pop %v477
    %v482 = vpow.pop %v478
    %v483 = vpow.pop %v479
    %488 = vst [vmem:[#allocation1] ss:$4 sm:$0xff] %v480
    %s489 = scalar_lea.vmem [#allocation1], 1
    %490 = vst [vmem:[%s489] ss:$4 sm:$0xff] %v481
    %s491 = scalar_lea.vmem [#allocation1], 2
    %492 = vst [vmem:[%s491] ss:$4 sm:$0xff] %v482
    %s493 = scalar_lea.vmem [#allocation1], 3
    %494 = vst [vmem:[%s493] ss:$4 sm:$0xff] %v483
    %v495 = vld.sshfl [vmem:[#allocation1] sm:$0xff pattern:$0x73625140]
    %v496 = vld.sshfl [vmem:[#allocation1 + $0x8] sm:$0xff pattern:$0x73625140]
    %v499 = vadd.f32 %v495, %v496
    %500 = vadd.xlane.f32.xlu0 %v499
    %v501 = vpop.xlane.xlu0 %500
    %v502 = vsub.f32 2.4091282, %v450
    %v503 = vlog2.pop %v501
    %v504 = vmul.f32 %v503, 0.6931472
    %v505 = vmul.f32 %v504, 0.67228
    %v506 = vsub.f32 %v502, %v505
    %v507 = vsub.f32 0.0, %v506
    %v510 = vunpack.c.l.s4 269488144
    %v511 = vunpack.c.0.s8 %v510
    %v512 = vperm.slane %v507, %v511
    %v514 = vunpack.c.l.s4 842150450
    %v515 = vunpack.c.0.s8 %v514
    %v516 = vperm.slane %v507, %v515
    %v518 = vunpack.c.l.s4 1414812756
    %v519 = vunpack.c.0.s8 %v518
    %v520 = vperm.slane %v507, %v519
    %v522 = vunpack.c.l.s4 1987475062
    %v523 = vunpack.c.0.s8 %v522
    %v524 = vperm.slane %v507, %v523
    %v529 = vmin.f32 %v25, %v512
    %v530 = vmin.f32 %v26, %v516
    %v531 = vmin.f32 %v27, %v520
    %v532 = vmin.f32 %v28, %v524
    %537 = vst [vmem:[#allocation1] ss:$4 sm:$0xff] %v529
    %s538 = scalar_lea.vmem [#allocation1], 1
    %539 = vst [vmem:[%s538] ss:$4 sm:$0xff] %v530
    %s540 = scalar_lea.vmem [#allocation1], 2
    %541 = vst [vmem:[%s540] ss:$4 sm:$0xff] %v531
    %s542 = scalar_lea.vmem [#allocation1], 3
    %543 = vst [vmem:[%s542] ss:$4 sm:$0xff] %v532
    %v544 = vld.sshfl [vmem:[#allocation1] sm:$0xff pattern:$0x73625140]
    %v545 = vld.sshfl [vmem:[#allocation1 + $0x8] sm:$0xff pattern:$0x73625140]
    %v548 = vmax.f32 %v544, %v545
    %549 = vmax.xlane.f32.xlu0 %v548
    %v550 = vpop.xlane.xlu0 %549
    %v553 = vunpack.c.l.s4 269488144
    %v554 = vunpack.c.0.s8 %v553
    %v555 = vperm.slane %v550, %v554
    %v557 = vunpack.c.l.s4 842150450
    %v558 = vunpack.c.0.s8 %v557
    %v559 = vperm.slane %v550, %v558
    %v561 = vunpack.c.l.s4 1414812756
    %v562 = vunpack.c.0.s8 %v561
    %v563 = vperm.slane %v550, %v562
    %v565 = vunpack.c.l.s4 1987475062
    %v566 = vunpack.c.0.s8 %v565
    %v567 = vperm.slane %v550, %v566
    %v572 = vsub.f32 %v529, %v555
    %v573 = vsub.f32 %v530, %v559
    %v574 = vsub.f32 %v531, %v563
    %v575 = vsub.f32 %v532, %v567
    %v576 = vmul.f32 %v572, 3.0656765
    %v577 = vmul.f32 %v573, 3.0656765
    %v578 = vmul.f32 %v574, 3.0656765
    %v579 = vmul.f32 %v575, 3.0656765
    %v580 = vpow.pop %v576
    %v581 = vpow.pop %v577
    %v582 = vpow.pop %v578
    %v583 = vpow.pop %v579
    %588 = vst [vmem:[#allocation1] ss:$4 sm:$0xff] %v580
    %s589 = scalar_lea.vmem [#allocation1], 1
    %590 = vst [vmem:[%s589] ss:$4 sm:$0xff] %v581
    %s591 = scalar_lea.vmem [#allocation1], 2
    %592 = vst [vmem:[%s591] ss:$4 sm:$0xff] %v582
    %s593 = scalar_lea.vmem [#allocation1], 3
    %594 = vst [vmem:[%s593] ss:$4 sm:$0xff] %v583
    %v595 = vld.sshfl [vmem:[#allocation1] sm:$0xff pattern:$0x73625140]
    %v596 = vld.sshfl [vmem:[#allocation1 + $0x8] sm:$0xff pattern:$0x73625140]
    %v599 = vadd.f32 %v595, %v596
    %600 = vadd.xlane.f32.xlu0 %v599
    %v601 = vpop.xlane.xlu0 %600
    %v602 = vsub.f32 1.6863897, %v550
    %v603 = vlog2.pop %v601
    %v604 = vmul.f32 %v603, 0.6931472
    %v605 = vmul.f32 %v604, 0.470596
    %v606 = vsub.f32 %v602, %v605
    %v607 = vsub.f32 0.0, %v606
    %v610 = vunpack.c.l.s4 269488144
    %v611 = vunpack.c.0.s8 %v610
    %v612 = vperm.slane %v607, %v611
    %v614 = vunpack.c.l.s4 842150450
    %v615 = vunpack.c.0.s8 %v614
    %v616 = vperm.slane %v607, %v615
    %v618 = vunpack.c.l.s4 1414812756
    %v619 = vunpack.c.0.s8 %v618
    %v620 = vperm.slane %v607, %v619
    %v622 = vunpack.c.l.s4 1987475062
    %v623 = vunpack.c.0.s8 %v622
    %v624 = vperm.slane %v607, %v623
    %v629 = vmin.f32 %v25, %v612
    %v630 = vmin.f32 %v26, %v616
    %v631 = vmin.f32 %v27, %v620
    %v632 = vmin.f32 %v28, %v624
    %637 = vst [vmem:[#allocation1] ss:$4 sm:$0xff] %v629
    %s638 = scalar_lea.vmem [#allocation1], 1
    %639 = vst [vmem:[%s638] ss:$4 sm:$0xff] %v630
    %s640 = scalar_lea.vmem [#allocation1], 2
    %641 = vst [vmem:[%s640] ss:$4 sm:$0xff] %v631
    %s642 = scalar_lea.vmem [#allocation1], 3
    %643 = vst [vmem:[%s642] ss:$4 sm:$0xff] %v632
    %v644 = vld.sshfl [vmem:[#allocation1] sm:$0xff pattern:$0x73625140]
    %v645 = vld.sshfl [vmem:[#allocation1 + $0x8] sm:$0xff pattern:$0x73625140]
    %v648 = vmax.f32 %v644, %v645
    %649 = vmax.xlane.f32.xlu0 %v648
    %v650 = vpop.xlane.xlu0 %649
    %v653 = vunpack.c.l.s4 269488144
    %v654 = vunpack.c.0.s8 %v653
    %v655 = vperm.slane %v650, %v654
    %v657 = vunpack.c.l.s4 842150450
    %v658 = vunpack.c.0.s8 %v657
    %v659 = vperm.slane %v650, %v658
    %v661 = vunpack.c.l.s4 1414812756
    %v662 = vunpack.c.0.s8 %v661
    %v663 = vperm.slane %v650, %v662
    %v665 = vunpack.c.l.s4 1987475062
    %v666 = vunpack.c.0.s8 %v665
    %v667 = vperm.slane %v650, %v666
    %v672 = vsub.f32 %v629, %v655
    %v673 = vsub.f32 %v630, %v659
    %v674 = vsub.f32 %v631, %v663
    %v675 = vsub.f32 %v632, %v667
    %v676 = vmul.f32 %v672, 4.3795376
    %v677 = vmul.f32 %v673, 4.3795376
    %v678 = vmul.f32 %v674, 4.3795376
    %v679 = vmul.f32 %v675, 4.3795376
    %v680 = vpow.pop %v676
    %v681 = vpow.pop %v677
    %v682 = vpow.pop %v678
    %v683 = vpow.pop %v679
    %688 = vst [vmem:[#allocation1] ss:$4 sm:$0xff] %v680
    %s689 = scalar_lea.vmem [#allocation1], 1
    %690 = vst [vmem:[%s689] ss:$4 sm:$0xff] %v681
    %s691 = scalar_lea.vmem [#allocation1], 2
    %692 = vst [vmem:[%s691] ss:$4 sm:$0xff] %v682
    %s693 = scalar_lea.vmem [#allocation1], 3
    %694 = vst [vmem:[%s693] ss:$4 sm:$0xff] %v683
    %v695 = vld.sshfl [vmem:[#allocation1] sm:$0xff pattern:$0x73625140]
    %v696 = vld.sshfl [vmem:[#allocation1 + $0x8] sm:$0xff pattern:$0x73625140]
    %v699 = vadd.f32 %v695, %v696
    %700 = vadd.xlane.f32.xlu0 %v699
    %v701 = vpop.xlane.xlu0 %700
    %v702 = vsub.f32 1.1804727, %v650
    %v703 = vlog2.pop %v701
    %v704 = vmul.f32 %v703, 0.6931472
    %v705 = vmul.f32 %v704, 0.3294172
    %v706 = vsub.f32 %v702, %v705
    %v707 = vsub.f32 0.0, %v706
    %v710 = vunpack.c.l.s4 269488144
    %v711 = vunpack.c.0.s8 %v710
    %v712 = vperm.slane %v707, %v711
    %v714 = vunpack.c.l.s4 842150450
    %v715 = vunpack.c.0.s8 %v714
    %v716 = vperm.slane %v707, %v715
    %v718 = vunpack.c.l.s4 1414812756
    %v719 = vunpack.c.0.s8 %v718
    %v720 = vperm.slane %v707, %v719
    %v722 = vunpack.c.l.s4 1987475062
    %v723 = vunpack.c.0.s8 %v722
    %v724 = vperm.slane %v707, %v723
    %v729 = vmin.f32 %v25, %v712
    %v730 = vmin.f32 %v26, %v716
    %v731 = vmin.f32 %v27, %v720
    %v732 = vmin.f32 %v28, %v724
    %737 = vst [vmem:[#allocation1] ss:$4 sm:$0xff] %v729
    %s738 = scalar_lea.vmem [#allocation1], 1
    %739 = vst [vmem:[%s738] ss:$4 sm:$0xff] %v730
    %s740 = scalar_lea.vmem [#allocation1], 2
    %741 = vst [vmem:[%s740] ss:$4 sm:$0xff] %v731
    %s742 = scalar_lea.vmem [#allocation1], 3
    %743 = vst [vmem:[%s742] ss:$4 sm:$0xff] %v732
    %v744 = vld.sshfl [vmem:[#allocation1] sm:$0xff pattern:$0x73625140]
    %v745 = vld.sshfl [vmem:[#allocation1 + $0x8] sm:$0xff pattern:$0x73625140]
    %v748 = vmax.f32 %v744, %v745
    %749 = vmax.xlane.f32.xlu0 %v748
    %v750 = vpop.xlane.xlu0 %749
    %v753 = vunpack.c.l.s4 269488144
    %v754 = vunpack.c.0.s8 %v753
    %v755 = vperm.slane %v750, %v754
    %v757 = vunpack.c.l.s4 842150450
    %v758 = vunpack.c.0.s8 %v757
    %v759 = vperm.slane %v750, %v758
    %v761 = vunpack.c.l.s4 1414812756
    %v762 = vunpack.c.0.s8 %v761
    %v763 = vperm.slane %v750, %v762
    %v765 = vunpack.c.l.s4 1987475062
    %v766 = vunpack.c.0.s8 %v765
    %v767 = vperm.slane %v750, %v766
    %v772 = vsub.f32 %v729, %v755
    %v773 = vsub.f32 %v730, %v759
    %v774 = vsub.f32 %v731, %v763
    %v775 = vsub.f32 %v732, %v767
    %v776 = vmul.f32 %v772, 6.2564826
    %v777 = vmul.f32 %v773, 6.2564826
    %v778 = vmul.f32 %v774, 6.2564826
    %v779 = vmul.f32 %v775, 6.2564826
    %v780 = vpow.pop %v776
    %v781 = vpow.pop %v777
    %v782 = vpow.pop %v778
    %v783 = vpow.pop %v779
    %788 = vst [vmem:[#allocation1] ss:$4 sm:$0xff] %v780
    %s789 = scalar_lea.vmem [#allocation1], 1
    %790 = vst [vmem:[%s789] ss:$4 sm:$0xff] %v781
    %s791 = scalar_lea.vmem [#allocation1], 2
    %792 = vst [vmem:[%s791] ss:$4 sm:$0xff] %v782
    %s793 = scalar_lea.vmem [#allocation1], 3
    %794 = vst [vmem:[%s793] ss:$4 sm:$0xff] %v783
    %v795 = vld.sshfl [vmem:[#allocation1] sm:$0xff pattern:$0x73625140]
    %v796 = vld.sshfl [vmem:[#allocation1 + $0x8] sm:$0xff pattern:$0x73625140]
    %v799 = vadd.f32 %v795, %v796
    %800 = vadd.xlane.f32.xlu0 %v799
    %v801 = vpop.xlane.xlu0 %800
    %v802 = vsub.f32 0.82633096, %v750
    %v803 = vlog2.pop %v801
    %v804 = vmul.f32 %v803, 0.6931472
    %v805 = vmul.f32 %v804, 0.23059204
    %v806 = vsub.f32 %v802, %v805
    %v807 = vsub.f32 0.0, %v806
    %v810 = vunpack.c.l.s4 269488144
    %v811 = vunpack.c.0.s8 %v810
    %v812 = vperm.slane %v807, %v811
    %v814 = vunpack.c.l.s4 842150450
    %v815 = vunpack.c.0.s8 %v814
    %v816 = vperm.slane %v807, %v815
    %v818 = vunpack.c.l.s4 1414812756
    %v819 = vunpack.c.0.s8 %v818
    %v820 = vperm.slane %v807, %v819
    %v822 = vunpack.c.l.s4 1987475062
    %v823 = vunpack.c.0.s8 %v822
    %v824 = vperm.slane %v807, %v823
    %v829 = vmin.f32 %v25, %v812
    %v830 = vmin.f32 %v26, %v816
    %v831 = vmin.f32 %v27, %v820
    %v832 = vmin.f32 %v28, %v824
    %837 = vst [vmem:[#allocation1] ss:$4 sm:$0xff] %v829
    %s838 = scalar_lea.vmem [#allocation1], 1
    %839 = vst [vmem:[%s838] ss:$4 sm:$0xff] %v830
    %s840 = scalar_lea.vmem [#allocation1], 2
    %841 = vst [vmem:[%s840] ss:$4 sm:$0xff] %v831
    %s842 = scalar_lea.vmem [#allocation1], 3
    %843 = vst [vmem:[%s842] ss:$4 sm:$0xff] %v832
    %v844 = vld.sshfl [vmem:[#allocation1] sm:$0xff pattern:$0x73625140]
    %v845 = vld.sshfl [vmem:[#allocation1 + $0x8] sm:$0xff pattern:$0x73625140]
    %v848 = vmax.f32 %v844, %v845
    %849 = vmax.xlane.f32.xlu0 %v848
    %v850 = vpop.xlane.xlu0 %849
    %v853 = vunpack.c.l.s4 269488144
    %v854 = vunpack.c.0.s8 %v853
    %v855 = vperm.slane %v850, %v854
    %v857 = vunpack.c.l.s4 842150450
    %v858 = vunpack.c.0.s8 %v857
    %v859 = vperm.slane %v850, %v858
    %v861 = vunpack.c.l.s4 1414812756
    %v862 = vunpack.c.0.s8 %v861
    %v863 = vperm.slane %v850, %v862
    %v865 = vunpack.c.l.s4 1987475062
    %v866 = vunpack.c.0.s8 %v865
    %v867 = vperm.slane %v850, %v866
    %v872 = vsub.f32 %v829, %v855
    %v873 = vsub.f32 %v830, %v859
    %v874 = vsub.f32 %v831, %v863
    %v875 = vsub.f32 %v832, %v867
    %v876 = vmul.f32 %v872, 8.937832
    %v877 = vmul.f32 %v873, 8.937832
    %v878 = vmul.f32 %v874, 8.937832
    %v879 = vmul.f32 %v875, 8.937832
    %v880 = vpow.pop %v876
    %v881 = vpow.pop %v877
    %v882 = vpow.pop %v878
    %v883 = vpow.pop %v879
    %888 = vst [vmem:[#allocation1] ss:$4 sm:$0xff] %v880
    %s889 = scalar_lea.vmem [#allocation1], 1
    %890 = vst [vmem:[%s889] ss:$4 sm:$0xff] %v881
    %s891 = scalar_lea.vmem [#allocation1], 2
    %892 = vst [vmem:[%s891] ss:$4 sm:$0xff] %v882
    %s893 = scalar_lea.vmem [#allocation1], 3
    %894 = vst [vmem:[%s893] ss:$4 sm:$0xff] %v883
    %v895 = vld.sshfl [vmem:[#allocation1] sm:$0xff pattern:$0x73625140]
    %v896 = vld.sshfl [vmem:[#allocation1 + $0x8] sm:$0xff pattern:$0x73625140]
    %v899 = vadd.f32 %v895, %v896
    %900 = vadd.xlane.f32.xlu0 %v899
    %v901 = vpop.xlane.xlu0 %900
    %v902 = vsub.f32 0.57843167, %v850
    %v903 = vlog2.pop %v901
    %v904 = vmul.f32 %v903, 0.6931472
    %v905 = vmul.f32 %v904, 0.16141443
    %v906 = vsub.f32 %v902, %v905
    %v907 = vsub.f32 0.0, %v906
    %v910 = vunpack.c.l.s4 269488144
    %v911 = vunpack.c.0.s8 %v910
    %v912 = vperm.slane %v907, %v911
    %v914 = vunpack.c.l.s4 842150450
    %v915 = vunpack.c.0.s8 %v914
    %v916 = vperm.slane %v907, %v915
    %v918 = vunpack.c.l.s4 1414812756
    %v919 = vunpack.c.0.s8 %v918
    %v920 = vperm.slane %v907, %v919
    %v922 = vunpack.c.l.s4 1987475062
    %v923 = vunpack.c.0.s8 %v922
    %v924 = vperm.slane %v907, %v923
    %v929 = vmin.f32 %v25, %v912
    %v930 = vmin.f32 %v26, %v916
    %v931 = vmin.f32 %v27, %v920
    %v932 = vmin.f32 %v28, %v924
    %937 = vst [vmem:[#allocation1] ss:$4 sm:$0xff] %v929
    %s938 = scalar_lea.vmem [#allocation1], 1
    %939 = vst [vmem:[%s938] ss:$4 sm:$0xff] %v930
    %s940 = scalar_lea.vmem [#allocation1], 2
    %941 = vst [vmem:[%s940] ss:$4 sm:$0xff] %v931
    %s942 = scalar_lea.vmem [#allocation1], 3
    %943 = vst [vmem:[%s942] ss:$4 sm:$0xff] %v932
    %v944 = vld.sshfl [vmem:[#allocation1] sm:$0xff pattern:$0x73625140]
    %v945 = vld.sshfl [vmem:[#allocation1 + $0x8] sm:$0xff pattern:$0x73625140]
    %v948 = vmax.f32 %v944, %v945
    %949 = vmax.xlane.f32.xlu0 %v948
    %v950 = vpop.xlane.xlu0 %949
    %v953 = vunpack.c.l.s4 269488144
    %v954 = vunpack.c.0.s8 %v953
    %v955 = vperm.slane %v950, %v954
    %v957 = vunpack.c.l.s4 842150450
    %v958 = vunpack.c.0.s8 %v957
    %v959 = vperm.slane %v950, %v958
    %v961 = vunpack.c.l.s4 1414812756
    %v962 = vunpack.c.0.s8 %v961
    %v963 = vperm.slane %v950, %v962
    %v965 = vunpack.c.l.s4 1987475062
    %v966 = vunpack.c.0.s8 %v965
    %v967 = vperm.slane %v950, %v966
    %v972 = vsub.f32 %v929, %v955
    %v973 = vsub.f32 %v930, %v959
    %v974 = vsub.f32 %v931, %v963
    %v975 = vsub.f32 %v932, %v967
    %v976 = vmul.f32 %v972, 12.768332
    %v977 = vmul.f32 %v973, 12.768332
    %v978 = vmul.f32 %v974, 12.768332
    %v979 = vmul.f32 %v975, 12.768332
    %v980 = vpow.pop %v976
    %v981 = vpow.pop %v977
    %v982 = vpow.pop %v978
    %v983 = vpow.pop %v979
    %988 = vst [vmem:[#allocation1] ss:$4 sm:$0xff] %v980
    %s989 = scalar_lea.vmem [#allocation1], 1
    %990 = vst [vmem:[%s989] ss:$4 sm:$0xff] %v981
    %s991 = scalar_lea.vmem [#allocation1], 2
    %992 = vst [vmem:[%s991] ss:$4 sm:$0xff] %v982
    %s993 = scalar_lea.vmem [#allocation1], 3
    %994 = vst [vmem:[%s993] ss:$4 sm:$0xff] %v983
    %v995 = vld.sshfl [vmem:[#allocation1] sm:$0xff pattern:$0x73625140]
    %v996 = vld.sshfl [vmem:[#allocation1 + $0x8] sm:$0xff pattern:$0x73625140]
    %v999 = vadd.f32 %v995, %v996
    %1000 = vadd.xlane.f32.xlu0 %v999
    %v1001 = vpop.xlane.xlu0 %1000
    %v1002 = vsub.f32 0.40490216, %v950
    %v1003 = vlog2.pop %v1001
    %v1004 = vmul.f32 %v1003, 0.6931472
    %v1005 = vmul.f32 %v1004, 0.112990096
    %v1006 = vsub.f32 %v1002, %v1005
    %v1007 = vsub.f32 0.0, %v1006
    %v1010 = vunpack.c.l.s4 269488144
    %v1011 = vunpack.c.0.s8 %v1010
    %v1012 = vperm.slane %v1007, %v1011
    %v1014 = vunpack.c.l.s4 842150450
    %v1015 = vunpack.c.0.s8 %v1014
    %v1016 = vperm.slane %v1007, %v1015
    %v1018 = vunpack.c.l.s4 1414812756
    %v1019 = vunpack.c.0.s8 %v1018
    %v1020 = vperm.slane %v1007, %v1019
    %v1022 = vunpack.c.l.s4 1987475062
    %v1023 = vunpack.c.0.s8 %v1022
    %v1024 = vperm.slane %v1007, %v1023
    %v1029 = vmin.f32 %v25, %v1012
    %v1030 = vmin.f32 %v26, %v1016
    %v1031 = vmin.f32 %v27, %v1020
    %v1032 = vmin.f32 %v28, %v1024
    %1037 = vst [vmem:[#allocation1] ss:$4 sm:$0xff] %v1029
    %s1038 = scalar_lea.vmem [#allocation1], 1
    %1039 = vst [vmem:[%s1038] ss:$4 sm:$0xff] %v1030
    %s1040 = scalar_lea.vmem [#allocation1], 2
    %1041 = vst [vmem:[%s1040] ss:$4 sm:$0xff] %v1031
    %s1042 = scalar_lea.vmem [#allocation1], 3
    %1043 = vst [vmem:[%s1042] ss:$4 sm:$0xff] %v1032
    %v1044 = vld.sshfl [vmem:[#allocation1] sm:$0xff pattern:$0x73625140]
    %v1045 = vld.sshfl [vmem:[#allocation1 + $0x8] sm:$0xff pattern:$0x73625140]
    %v1048 = vmax.f32 %v1044, %v1045
    %1049 = vmax.xlane.f32.xlu0 %v1048
    %v1050 = vpop.xlane.xlu0 %1049
    %v1053 = vunpack.c.l.s4 269488144
    %v1054 = vunpack.c.0.s8 %v1053
    %v1055 = vperm.slane %v1050, %v1054
    %v1057 = vunpack.c.l.s4 842150450
    %v1058 = vunpack.c.0.s8 %v1057
    %v1059 = vperm.slane %v1050, %v1058
    %v1061 = vunpack.c.l.s4 1414812756
    %v1062 = vunpack.c.0.s8 %v1061
    %v1063 = vperm.slane %v1050, %v1062
    %v1065 = vunpack.c.l.s4 1987475062
    %v1066 = vunpack.c.0.s8 %v1065
    %v1067 = vperm.slane %v1050, %v1066
    %v1072 = vsub.f32 %v1029, %v1055
    %v1073 = vsub.f32 %v1030, %v1059
    %v1074 = vsub.f32 %v1031, %v1063
    %v1075 = vsub.f32 %v1032, %v1067
    %v1076 = vmul.f32 %v1072, 18.240473
    %v1077 = vmul.f32 %v1073, 18.240473
    %v1078 = vmul.f32 %v1074, 18.240473
    %v1079 = vmul.f32 %v1075, 18.240473
    %v1080 = vpow.pop %v1076
    %v1081 = vpow.pop %v1077
    %v1082 = vpow.pop %v1078
    %v1083 = vpow.pop %v1079
    %1088 = vst [vmem:[#allocation1] ss:$4 sm:$0xff] %v1080
    %s1089 = scalar_lea.vmem [#allocation1], 1
    %1090 = vst [vmem:[%s1089] ss:$4 sm:$0xff] %v1081
    %s1091 = scalar_lea.vmem [#allocation1], 2
    %1092 = vst [vmem:[%s1091] ss:$4 sm:$0xff] %v1082
    %s1093 = scalar_lea.vmem [#allocation1], 3
    %1094 = vst [vmem:[%s1093] ss:$4 sm:$0xff] %v1083
    %v1095 = vld.sshfl [vmem:[#allocation1] sm:$0xff pattern:$0x73625140]
    %v1096 = vld.sshfl [vmem:[#allocation1 + $0x8] sm:$0xff pattern:$0x73625140]
    %v1099 = vadd.f32 %v1095, %v1096
    %1100 = vadd.xlane.f32.xlu0 %v1099
    %v1101 = vpop.xlane.xlu0 %1100
    %v1102 = vsub.f32 0.2834315, %v1050
    %v1103 = vlog2.pop %v1101
    %v1104 = vmul.f32 %v1103, 0.6931472
    %v1105 = vmul.f32 %v1104, 0.07909307
    %v1106 = vsub.f32 %v1102, %v1105
    %v1107 = vsub.f32 0.0, %v1106
    %v1110 = vunpack.c.l.s4 269488144
    %v1111 = vunpack.c.0.s8 %v1110
    %v1112 = vperm.slane %v1107, %v1111
    %v1114 = vunpack.c.l.s4 842150450
    %v1115 = vunpack.c.0.s8 %v1114
    %v1116 = vperm.slane %v1107, %v1115
    %v1118 = vunpack.c.l.s4 1414812756
    %v1119 = vunpack.c.0.s8 %v1118
    %v1120 = vperm.slane %v1107, %v1119
    %v1122 = vunpack.c.l.s4 1987475062
    %v1123 = vunpack.c.0.s8 %v1122
    %v1124 = vperm.slane %v1107, %v1123
    %v1129 = vmin.f32 %v25, %v1112
    %v1130 = vmin.f32 %v26, %v1116
    %v1131 = vmin.f32 %v27, %v1120
    %v1132 = vmin.f32 %v28, %v1124
    %1137 = vst [vmem:[#allocation1] ss:$4 sm:$0xff] %v1129
    %s1138 = scalar_lea.vmem [#allocation1], 1
    %1139 = vst [vmem:[%s1138] ss:$4 sm:$0xff] %v1130
    %s1140 = scalar_lea.vmem [#allocation1], 2
    %1141 = vst [vmem:[%s1140] ss:$4 sm:$0xff] %v1131
    %s1142 = scalar_lea.vmem [#allocation1], 3
    %1143 = vst [vmem:[%s1142] ss:$4 sm:$0xff] %v1132
    %v1144 = vld.sshfl [vmem:[#allocation1] sm:$0xff pattern:$0x73625140]
    %v1145 = vld.sshfl [vmem:[#allocation1 + $0x8] sm:$0xff pattern:$0x73625140]
    %v1148 = vmax.f32 %v1144, %v1145
    %1149 = vmax.xlane.f32.xlu0 %v1148
    %v1150 = vpop.xlane.xlu0 %1149
    %v1153 = vunpack.c.l.s4 269488144
    %v1154 = vunpack.c.0.s8 %v1153
    %v1155 = vperm.slane %v1150, %v1154
    %v1157 = vunpack.c.l.s4 842150450
    %v1158 = vunpack.c.0.s8 %v1157
    %v1159 = vperm.slane %v1150, %v1158
    %v1161 = vunpack.c.l.s4 1414812756
    %v1162 = vunpack.c.0.s8 %v1161
    %v1163 = vperm.slane %v1150, %v1162
    %v1165 = vunpack.c.l.s4 1987475062
    %v1166 = vunpack.c.0.s8 %v1165
    %v1167 = vperm.slane %v1150, %v1166
    %v1172 = vsub.f32 %v1129, %v1155
    %v1173 = vsub.f32 %v1130, %v1159
    %v1174 = vsub.f32 %v1131, %v1163
    %v1175 = vsub.f32 %v1132, %v1167
    %v1176 = vmul.f32 %v1172, 26.05782
    %v1177 = vmul.f32 %v1173, 26.05782
    %v1178 = vmul.f32 %v1174, 26.05782
    %v1179 = vmul.f32 %v1175, 26.05782
    %v1180 = vpow.pop %v1176
    %v1181 = vpow.pop %v1177
    %v1182 = vpow.pop %v1178
    %v1183 = vpow.pop %v1179
    %1188 = vst [vmem:[#allocation1] ss:$4 sm:$0xff] %v1180
    %s1189 = scalar_lea.vmem [#allocation1], 1
    %1190 = vst [vmem:[%s1189] ss:$4 sm:$0xff] %v1181
    %s1191 = scalar_lea.vmem [#allocation1], 2
    %1192 = vst [vmem:[%s1191] ss:$4 sm:$0xff] %v1182
    %s1193 = scalar_lea.vmem [#allocation1], 3
    %1194 = vst [vmem:[%s1193] ss:$4 sm:$0xff] %v1183
    %v1195 = vld.sshfl [vmem:[#allocation1] sm:$0xff pattern:$0x73625140]
    %v1196 = vld.sshfl [vmem:[#allocation1 + $0x8] sm:$0xff pattern:$0x73625140]
    %v1199 = vadd.f32 %v1195, %v1196
    %1200 = vadd.xlane.f32.xlu0 %v1199
    %v1201 = vpop.xlane.xlu0 %1200
    %v1202 = vsub.f32 0.19840206, %v1150
    %v1203 = vlog2.pop %v1201
    %v1204 = vmul.f32 %v1203, 0.6931472
    %v1205 = vmul.f32 %v1204, 0.05536515
    %v1206 = vsub.f32 %v1202, %v1205
    %v1207 = vsub.f32 0.0, %v1206
    %v1210 = vunpack.c.l.s4 269488144
    %v1211 = vunpack.c.0.s8 %v1210
    %v1212 = vperm.slane %v1207, %v1211
    %v1214 = vunpack.c.l.s4 842150450
    %v1215 = vunpack.c.0.s8 %v1214
    %v1216 = vperm.slane %v1207, %v1215
    %v1218 = vunpack.c.l.s4 1414812756
    %v1219 = vunpack.c.0.s8 %v1218
    %v1220 = vperm.slane %v1207, %v1219
    %v1222 = vunpack.c.l.s4 1987475062
    %v1223 = vunpack.c.0.s8 %v1222
    %v1224 = vperm.slane %v1207, %v1223
    %v1229 = vmin.f32 %v25, %v1212
    %v1230 = vmin.f32 %v26, %v1216
    %v1231 = vmin.f32 %v27, %v1220
    %v1232 = vmin.f32 %v28, %v1224
    %1237 = vst [vmem:[#allocation1] ss:$4 sm:$0xff] %v1229
    %s1238 = scalar_lea.vmem [#allocation1], 1
    %1239 = vst [vmem:[%s1238] ss:$4 sm:$0xff] %v1230
    %s1240 = scalar_lea.vmem [#allocation1], 2
    %1241 = vst [vmem:[%s1240] ss:$4 sm:$0xff] %v1231
    %s1242 = scalar_lea.vmem [#allocation1], 3
    %1243 = vst [vmem:[%s1242] ss:$4 sm:$0xff] %v1232
    %v1244 = vld.sshfl [vmem:[#allocation1] sm:$0xff pattern:$0x73625140]
    %v1245 = vld.sshfl [vmem:[#allocation1 + $0x8] sm:$0xff pattern:$0x73625140]
    %v1248 = vmax.f32 %v1244, %v1245
    %1249 = vmax.xlane.f32.xlu0 %v1248
    %v1250 = vpop.xlane.xlu0 %1249
    %v1253 = vunpack.c.l.s4 269488144
    %v1254 = vunpack.c.0.s8 %v1253
    %v1255 = vperm.slane %v1250, %v1254
    %v1257 = vunpack.c.l.s4 842150450
    %v1258 = vunpack.c.0.s8 %v1257
    %v1259 = vperm.slane %v1250, %v1258
    %v1261 = vunpack.c.l.s4 1414812756
    %v1262 = vunpack.c.0.s8 %v1261
    %v1263 = vperm.slane %v1250, %v1262
    %v1265 = vunpack.c.l.s4 1987475062
    %v1266 = vunpack.c.0.s8 %v1265
    %v1267 = vperm.slane %v1250, %v1266
    %v1272 = vsub.f32 %v1229, %v1255
    %v1273 = vsub.f32 %v1230, %v1259
    %v1274 = vsub.f32 %v1231, %v1263
    %v1275 = vsub.f32 %v1232, %v1267
    %v1276 = vmul.f32 %v1272, 37.225456
    %v1277 = vmul.f32 %v1273, 37.225456
    %v1278 = vmul.f32 %v1274, 37.225456
    %v1279 = vmul.f32 %v1275, 37.225456
    %v1280 = vpow.pop %v1276
    %v1281 = vpow.pop %v1277
    %v1282 = vpow.pop %v1278
    %v1283 = vpow.pop %v1279
    %1288 = vst [vmem:[#allocation1] ss:$4 sm:$0xff] %v1280
    %s1289 = scalar_lea.vmem [#allocation1], 1
    %1290 = vst [vmem:[%s1289] ss:$4 sm:$0xff] %v1281
    %s1291 = scalar_lea.vmem [#allocation1], 2
    %1292 = vst [vmem:[%s1291] ss:$4 sm:$0xff] %v1282
    %s1293 = scalar_lea.vmem [#allocation1], 3
    %1294 = vst [vmem:[%s1293] ss:$4 sm:$0xff] %v1283
    %v1295 = vld.sshfl [vmem:[#allocation1] sm:$0xff pattern:$0x73625140]
    %v1296 = vld.sshfl [vmem:[#allocation1 + $0x8] sm:$0xff pattern:$0x73625140]
    %v1299 = vadd.f32 %v1295, %v1296
    %1300 = vadd.xlane.f32.xlu0 %v1299
    %v1301 = vpop.xlane.xlu0 %1300
    %v1302 = vsub.f32 0.13888144, %v1250
    %v1303 = vlog2.pop %v1301
    %v1304 = vmul.f32 %v1303, 0.6931472
    %v1305 = vmul.f32 %v1304, 0.038755603
    %v1306 = vsub.f32 %v1302, %v1305
    %v1307 = vmul.f32 %v25, 48.089836
    %v1308 = vmul.f32 %v26, 48.089836
    %v1309 = vmul.f32 %v27, 48.089836
    %v1310 = vmul.f32 %v28, 48.089836
    %v1311 = vmul.f32 %v1306, -48.089836
    %v1314 = vunpack.c.l.s4 269488144
    %v1315 = vunpack.c.0.s8 %v1314
    %v1316 = vperm.slane %v1311, %v1315
    %v1318 = vunpack.c.l.s4 842150450
    %v1319 = vunpack.c.0.s8 %v1318
    %v1320 = vperm.slane %v1311, %v1319
    %v1322 = vunpack.c.l.s4 1414812756
    %v1323 = vunpack.c.0.s8 %v1322
    %v1324 = vperm.slane %v1311, %v1323
    %v1326 = vunpack.c.l.s4 1987475062
    %v1327 = vunpack.c.0.s8 %v1326
    %v1328 = vperm.slane %v1311, %v1327
    %v1333 = vmin.f32 %v1307, %v1316
    %v1334 = vmin.f32 %v1308, %v1320
    %v1335 = vmin.f32 %v1309, %v1324
    %v1336 = vmin.f32 %v1310, %v1328
    %1341 = vst [vmem:[#allocation1] ss:$4 sm:$0xff] %v1333
    %s1342 = scalar_lea.vmem [#allocation1], 1
    %1343 = vst [vmem:[%s1342] ss:$4 sm:$0xff] %v1334
    %s1344 = scalar_lea.vmem [#allocation1], 2
    %1345 = vst [vmem:[%s1344] ss:$4 sm:$0xff] %v1335
    %s1346 = scalar_lea.vmem [#allocation1], 3
    %1347 = vst [vmem:[%s1346] ss:$4 sm:$0xff] %v1336
    %v1348 = vld.sshfl [vmem:[#allocation1] sm:$0xff pattern:$0x73625140]
    %v1349 = vld.sshfl [vmem:[#allocation1 + $0x8] sm:$0xff pattern:$0x73625140]
    %v1352 = vmax.f32 %v1348, %v1349
    %1353 = vmax.xlane.f32.xlu0 %v1352
    %v1354 = vpop.xlane.xlu0 %1353
    %v1357 = vunpack.c.l.s4 269488144
    %v1358 = vunpack.c.0.s8 %v1357
    %v1359 = vperm.slane %v1354, %v1358
    %v1361 = vunpack.c.l.s4 842150450
    %v1362 = vunpack.c.0.s8 %v1361
    %v1363 = vperm.slane %v1354, %v1362
    %v1365 = vunpack.c.l.s4 1414812756
    %v1366 = vunpack.c.0.s8 %v1365
    %v1367 = vperm.slane %v1354, %v1366
    %v1369 = vunpack.c.l.s4 1987475062
    %v1370 = vunpack.c.0.s8 %v1369
    %v1371 = vperm.slane %v1354, %v1370
    %v1376 = vsub.f32 %v1333, %v1359
    %v1377 = vsub.f32 %v1334, %v1363
    %v1378 = vsub.f32 %v1335, %v1367
    %v1379 = vsub.f32 %v1336, %v1371
    %v1380 = vpow.pop %v1376
    %v1381 = vpow.pop %v1377
    %v1382 = vpow.pop %v1378
    %v1383 = vpow.pop %v1379
    %1388 = vst [vmem:[#allocation1] ss:$4 sm:$0xff] %v1380
    %s1389 = scalar_lea.vmem [#allocation1], 1
    %1390 = vst [vmem:[%s1389] ss:$4 sm:$0xff] %v1381
    %s1391 = scalar_lea.vmem [#allocation1], 2
    %1392 = vst [vmem:[%s1391] ss:$4 sm:$0xff] %v1382
    %s1393 = scalar_lea.vmem [#allocation1], 3
    %1394 = vst [vmem:[%s1393] ss:$4 sm:$0xff] %v1383
    %v1395 = vld.sshfl [vmem:[#allocation1] sm:$0xff pattern:$0x73625140]
    %v1396 = vld.sshfl [vmem:[#allocation1 + $0x8] sm:$0xff pattern:$0x73625140]
    %v1399 = vadd.f32 %v1395, %v1396
    %1400 = vadd.xlane.f32.xlu0 %v1399
    %v1401 = vpop.xlane.xlu0 %1400
    %v1402 = vmul.f32 %v1354, 0.020794416
    %v1403 = vsub.f32 0.10750557, %v1402
    %v1404 = vlog2.pop %v1401
    %v1405 = vmul.f32 %v1404, 0.6931472
    %v1406 = vmul.f32 %v1405, 0.03
    %v1407 = vsub.f32 %v1403, %v1406
    %v1408 = vmul.f32 %v1407, -48.089836
    %v1411 = vunpack.c.l.s4 269488144
    %v1412 = vunpack.c.0.s8 %v1411
    %v1413 = vperm.slane %v1408, %v1412
    %v1415 = vunpack.c.l.s4 842150450
    %v1416 = vunpack.c.0.s8 %v1415
    %v1417 = vperm.slane %v1408, %v1416
    %v1419 = vunpack.c.l.s4 1414812756
    %v1420 = vunpack.c.0.s8 %v1419
    %v1421 = vperm.slane %v1408, %v1420
    %v1423 = vunpack.c.l.s4 1987475062
    %v1424 = vunpack.c.0.s8 %v1423
    %v1425 = vperm.slane %v1408, %v1424
    %v1430 = vmin.f32 %v1307, %v1413
    %v1431 = vmin.f32 %v1308, %v1417
    %v1432 = vmin.f32 %v1309, %v1421
    %v1433 = vmin.f32 %v1310, %v1425
    %1438 = vst [vmem:[#allocation1] ss:$4 sm:$0xff] %v1430
    %s1439 = scalar_lea.vmem [#allocation1], 1
    %1440 = vst [vmem:[%s1439] ss:$4 sm:$0xff] %v1431
    %s1441 = scalar_lea.vmem [#allocation1], 2
    %1442 = vst [vmem:[%s1441] ss:$4 sm:$0xff] %v1432
    %s1443 = scalar_lea.vmem [#allocation1], 3
    %1444 = vst [vmem:[%s1443] ss:$4 sm:$0xff] %v1433
    %v1445 = vld.sshfl [vmem:[#allocation1] sm:$0xff pattern:$0x73625140]
    %v1446 = vld.sshfl [vmem:[#allocation1 + $0x8] sm:$0xff pattern:$0x73625140]
    %v1449 = vmax.f32 %v1445, %v1446
    %1450 = vmax.xlane.f32.xlu0 %v1449
    %v1451 = vpop.xlane.xlu0 %1450
    %v1454 = vunpack.c.l.s4 269488144
    %v1455 = vunpack.c.0.s8 %v1454
    %v1456 = vperm.slane %v1451, %v1455
    %v1458 = vunpack.c.l.s4 842150450
    %v1459 = vunpack.c.0.s8 %v1458
    %v1460 = vperm.slane %v1451, %v1459
    %v1462 = vunpack.c.l.s4 1414812756
    %v1463 = vunpack.c.0.s8 %v1462
    %v1464 = vperm.slane %v1451, %v1463
    %v1466 = vunpack.c.l.s4 1987475062
    %v1467 = vunpack.c.0.s8 %v1466
    %v1468 = vperm.slane %v1451, %v1467
    %v1473 = vsub.f32 %v1430, %v1456
    %v1474 = vsub.f32 %v1431, %v1460
    %v1475 = vsub.f32 %v1432, %v1464
    %v1476 = vsub.f32 %v1433, %v1468
    %v1477 = vpow.pop %v1473
    %v1478 = vpow.pop %v1474
    %v1479 = vpow.pop %v1475
    %v1480 = vpow.pop %v1476
    %1485 = vst [vmem:[#allocation1] ss:$4 sm:$0xff] %v1477
    %s1486 = scalar_lea.vmem [#allocation1], 1
    %1487 = vst [vmem:[%s1486] ss:$4 sm:$0xff] %v1478
    %s1488 = scalar_lea.vmem [#allocation1], 2
    %1489 = vst [vmem:[%s1488] ss:$4 sm:$0xff] %v1479
    %s1490 = scalar_lea.vmem [#allocation1], 3
    %1491 = vst [vmem:[%s1490] ss:$4 sm:$0xff] %v1480
    %v1492 = vld.sshfl [vmem:[#allocation1] sm:$0xff pattern:$0x73625140]
    %v1493 = vld.sshfl [vmem:[#allocation1 + $0x8] sm:$0xff pattern:$0x73625140]
    %v1496 = vadd.f32 %v1492, %v1493
    %1497 = vadd.xlane.f32.xlu0 %v1496
    %v1498 = vpop.xlane.xlu0 %1497
    %v1499 = vmul.f32 %v1451, 0.020794416
    %v1500 = vsub.f32 0.10750557, %v1499
    %v1501 = vlog2.pop %v1498
    %v1502 = vmul.f32 %v1501, 0.6931472
    %v1503 = vmul.f32 %v1502, 0.03
    %v1504 = vsub.f32 %v1500, %v1503
    %v1505 = vmul.f32 %v1504, -48.089836
    %v1508 = vunpack.c.l.s4 269488144
    %v1509 = vunpack.c.0.s8 %v1508
    %v1510 = vperm.slane %v1505, %v1509
    %v1512 = vunpack.c.l.s4 842150450
    %v1513 = vunpack.c.0.s8 %v1512
    %v1514 = vperm.slane %v1505, %v1513
    %v1516 = vunpack.c.l.s4 1414812756
    %v1517 = vunpack.c.0.s8 %v1516
    %v1518 = vperm.slane %v1505, %v1517
    %v1520 = vunpack.c.l.s4 1987475062
    %v1521 = vunpack.c.0.s8 %v1520
    %v1522 = vperm.slane %v1505, %v1521
    %v1527 = vmin.f32 %v1307, %v1510
    %v1528 = vmin.f32 %v1308, %v1514
    %v1529 = vmin.f32 %v1309, %v1518
    %v1530 = vmin.f32 %v1310, %v1522
    %1535 = vst [vmem:[#allocation1] ss:$4 sm:$0xff] %v1527
    %s1536 = scalar_lea.vmem [#allocation1], 1
    %1537 = vst [vmem:[%s1536] ss:$4 sm:$0xff] %v1528
    %s1538 = scalar_lea.vmem [#allocation1], 2
    %1539 = vst [vmem:[%s1538] ss:$4 sm:$0xff] %v1529
    %s1540 = scalar_lea.vmem [#allocation1], 3
    %1541 = vst [vmem:[%s1540] ss:$4 sm:$0xff] %v1530
    %v1542 = vld.sshfl [vmem:[#allocation1] sm:$0xff pattern:$0x73625140]
    %v1543 = vld.sshfl [vmem:[#allocation1 + $0x8] sm:$0xff pattern:$0x73625140]
    %v1546 = vmax.f32 %v1542, %v1543
    %1547 = vmax.xlane.f32.xlu0 %v1546
    %v1548 = vpop.xlane.xlu0 %1547
    %v1551 = vunpack.c.l.s4 269488144
    %v1552 = vunpack.c.0.s8 %v1551
    %v1553 = vperm.slane %v1548, %v1552
    %v1555 = vunpack.c.l.s4 842150450
    %v1556 = vunpack.c.0.s8 %v1555
    %v1557 = vperm.slane %v1548, %v1556
    %v1559 = vunpack.c.l.s4 1414812756
    %v1560 = vunpack.c.0.s8 %v1559
    %v1561 = vperm.slane %v1548, %v1560
    %v1563 = vunpack.c.l.s4 1987475062
    %v1564 = vunpack.c.0.s8 %v1563
    %v1565 = vperm.slane %v1548, %v1564
    %v1570 = vsub.f32 %v1527, %v1553
    %v1571 = vsub.f32 %v1528, %v1557
    %v1572 = vsub.f32 %v1529, %v1561
    %v1573 = vsub.f32 %v1530, %v1565
    %v1574 = vpow.pop %v1570
    %v1575 = vpow.pop %v1571
    %v1576 = vpow.pop %v1572
    %v1577 = vpow.pop %v1573
    %1582 = vst [vmem:[#allocation1] ss:$4 sm:$0xff] %v1574
    %s1583 = scalar_lea.vmem [#allocation1], 1
    %1584 = vst [vmem:[%s1583] ss:$4 sm:$0xff] %v1575
    %s1585 = scalar_lea.vmem [#allocation1], 2
    %1586 = vst [vmem:[%s1585] ss:$4 sm:$0xff] %v1576
    %s1587 = scalar_lea.vmem [#allocation1], 3
    %1588 = vst [vmem:[%s1587] ss:$4 sm:$0xff] %v1577
    %v1589 = vld.sshfl [vmem:[#allocation1] sm:$0xff pattern:$0x73625140]
    %v1590 = vld.sshfl [vmem:[#allocation1 + $0x8] sm:$0xff pattern:$0x73625140]
    %v1593 = vadd.f32 %v1589, %v1590
    %1594 = vadd.xlane.f32.xlu0 %v1593
    %v1595 = vpop.xlane.xlu0 %1594
    %v1596 = vmul.f32 %v1548, 0.020794416
    %v1597 = vsub.f32 0.10750557, %v1596
    %v1598 = vlog2.pop %v1595
    %v1599 = vmul.f32 %v1598, 0.6931472
    %v1600 = vmul.f32 %v1599, 0.03
    %v1601 = vsub.f32 %v1597, %v1600
    %v1602 = vmul.f32 %v1601, -48.089836
    %v1605 = vunpack.c.l.s4 269488144
    %v1606 = vunpack.c.0.s8 %v1605
    %v1607 = vperm.slane %v1602, %v1606
    %v1609 = vunpack.c.l.s4 842150450
    %v1610 = vunpack.c.0.s8 %v1609
    %v1611 = vperm.slane %v1602, %v1610
    %v1613 = vunpack.c.l.s4 1414812756
    %v1614 = vunpack.c.0.s8 %v1613
    %v1615 = vperm.slane %v1602, %v1614
    %v1617 = vunpack.c.l.s4 1987475062
    %v1618 = vunpack.c.0.s8 %v1617
    %v1619 = vperm.slane %v1602, %v1618
    %v1624 = vmin.f32 %v1307, %v1607
    %v1625 = vmin.f32 %v1308, %v1611
    %v1626 = vmin.f32 %v1309, %v1615
    %v1627 = vmin.f32 %v1310, %v1619
    %1632 = vst [vmem:[#allocation1] ss:$4 sm:$0xff] %v1624
    %s1633 = scalar_lea.vmem [#allocation1], 1
    %1634 = vst [vmem:[%s1633] ss:$4 sm:$0xff] %v1625
    %s1635 = scalar_lea.vmem [#allocation1], 2
    %1636 = vst [vmem:[%s1635] ss:$4 sm:$0xff] %v1626
    %s1637 = scalar_lea.vmem [#allocation1], 3
    %1638 = vst [vmem:[%s1637] ss:$4 sm:$0xff] %v1627
    %v1639 = vld.sshfl [vmem:[#allocation1] sm:$0xff pattern:$0x73625140]
    %v1640 = vld.sshfl [vmem:[#allocation1 + $0x8] sm:$0xff pattern:$0x73625140]
    %v1643 = vmax.f32 %v1639, %v1640
    %1644 = vmax.xlane.f32.xlu0 %v1643
    %v1645 = vpop.xlane.xlu0 %1644
    %v1648 = vunpack.c.l.s4 269488144
    %v1649 = vunpack.c.0.s8 %v1648
    %v1650 = vperm.slane %v1645, %v1649
    %v1652 = vunpack.c.l.s4 842150450
    %v1653 = vunpack.c.0.s8 %v1652
    %v1654 = vperm.slane %v1645, %v1653
    %v1656 = vunpack.c.l.s4 1414812756
    %v1657 = vunpack.c.0.s8 %v1656
    %v1658 = vperm.slane %v1645, %v1657
    %v1660 = vunpack.c.l.s4 1987475062
    %v1661 = vunpack.c.0.s8 %v1660
    %v1662 = vperm.slane %v1645, %v1661
    %v1667 = vsub.f32 %v1624, %v1650
    %v1668 = vsub.f32 %v1625, %v1654
    %v1669 = vsub.f32 %v1626, %v1658
    %v1670 = vsub.f32 %v1627, %v1662
    %v1671 = vpow.pop %v1667
    %v1672 = vpow.pop %v1668
    %v1673 = vpow.pop %v1669
    %v1674 = vpow.pop %v1670
    %1679 = vst [vmem:[#allocation1] ss:$4 sm:$0xff] %v1671
    %s1680 = scalar_lea.vmem [#allocation1], 1
    %1681 = vst [vmem:[%s1680] ss:$4 sm:$0xff] %v1672
    %s1682 = scalar_lea.vmem [#allocation1], 2
    %1683 = vst [vmem:[%s1682] ss:$4 sm:$0xff] %v1673
    %s1684 = scalar_lea.vmem [#allocation1], 3
    %1685 = vst [vmem:[%s1684] ss:$4 sm:$0xff] %v1674
    %v1686 = vld.sshfl [vmem:[#allocation1] sm:$0xff pattern:$0x73625140]
    %v1687 = vld.sshfl [vmem:[#allocation1 + $0x8] sm:$0xff pattern:$0x73625140]
    %v1690 = vadd.f32 %v1686, %v1687
    %1691 = vadd.xlane.f32.xlu0 %v1690
    %v1692 = vpop.xlane.xlu0 %1691
    %v1693 = vmul.f32 %v1645, 0.020794416
    %v1694 = vsub.f32 0.10750557, %v1693
    %v1695 = vlog2.pop %v1692
    %v1696 = vmul.f32 %v1695, 0.6931472
    %v1697 = vmul.f32 %v1696, 0.03
    %v1698 = vsub.f32 %v1694, %v1697
    %v1699 = vmul.f32 %v1698, -48.089836
    %v1702 = vunpack.c.l.s4 269488144
    %v1703 = vunpack.c.0.s8 %v1702
    %v1704 = vperm.slane %v1699, %v1703
    %v1706 = vunpack.c.l.s4 842150450
    %v1707 = vunpack.c.0.s8 %v1706
    %v1708 = vperm.slane %v1699, %v1707
    %v1710 = vunpack.c.l.s4 1414812756
    %v1711 = vunpack.c.0.s8 %v1710
    %v1712 = vperm.slane %v1699, %v1711
    %v1714 = vunpack.c.l.s4 1987475062
    %v1715 = vunpack.c.0.s8 %v1714
    %v1716 = vperm.slane %v1699, %v1715
    %v1721 = vmin.f32 %v1307, %v1704
    %v1722 = vmin.f32 %v1308, %v1708
    %v1723 = vmin.f32 %v1309, %v1712
    %v1724 = vmin.f32 %v1310, %v1716
    %1729 = vst [vmem:[#allocation1] ss:$4 sm:$0xff] %v1721
    %s1730 = scalar_lea.vmem [#allocation1], 1
    %1731 = vst [vmem:[%s1730] ss:$4 sm:$0xff] %v1722
    %s1732 = scalar_lea.vmem [#allocation1], 2
    %1733 = vst [vmem:[%s1732] ss:$4 sm:$0xff] %v1723
    %s1734 = scalar_lea.vmem [#allocation1], 3
    %1735 = vst [vmem:[%s1734] ss:$4 sm:$0xff] %v1724
    %v1736 = vld.sshfl [vmem:[#allocation1] sm:$0xff pattern:$0x73625140]
    %v1737 = vld.sshfl [vmem:[#allocation1 + $0x8] sm:$0xff pattern:$0x73625140]
    %v1740 = vmax.f32 %v1736, %v1737
    %1741 = vmax.xlane.f32.xlu0 %v1740
    %v1742 = vpop.xlane.xlu0 %1741
    %v1745 = vunpack.c.l.s4 269488144
    %v1746 = vunpack.c.0.s8 %v1745
    %v1747 = vperm.slane %v1742, %v1746
    %v1749 = vunpack.c.l.s4 842150450
    %v1750 = vunpack.c.0.s8 %v1749
    %v1751 = vperm.slane %v1742, %v1750
    %v1753 = vunpack.c.l.s4 1414812756
    %v1754 = vunpack.c.0.s8 %v1753
    %v1755 = vperm.slane %v1742, %v1754
    %v1757 = vunpack.c.l.s4 1987475062
    %v1758 = vunpack.c.0.s8 %v1757
    %v1759 = vperm.slane %v1742, %v1758
    %v1764 = vsub.f32 %v1721, %v1747
    %v1765 = vsub.f32 %v1722, %v1751
    %v1766 = vsub.f32 %v1723, %v1755
    %v1767 = vsub.f32 %v1724, %v1759
    %v1768 = vpow.pop %v1764
    %v1769 = vpow.pop %v1765
    %v1770 = vpow.pop %v1766
    %v1771 = vpow.pop %v1767
    %1776 = vst [vmem:[#allocation1] ss:$4 sm:$0xff] %v1768
    %s1777 = scalar_lea.vmem [#allocation1], 1
    %1778 = vst [vmem:[%s1777] ss:$4 sm:$0xff] %v1769
    %s1779 = scalar_lea.vmem [#allocation1], 2
    %1780 = vst [vmem:[%s1779] ss:$4 sm:$0xff] %v1770
    %s1781 = scalar_lea.vmem [#allocation1], 3
    %1782 = vst [vmem:[%s1781] ss:$4 sm:$0xff] %v1771
    %v1783 = vld.sshfl [vmem:[#allocation1] sm:$0xff pattern:$0x73625140]
    %v1784 = vld.sshfl [vmem:[#allocation1 + $0x8] sm:$0xff pattern:$0x73625140]
    %v1787 = vadd.f32 %v1783, %v1784
    %1788 = vadd.xlane.f32.xlu0 %v1787
    %v1789 = vpop.xlane.xlu0 %1788
    %v1790 = vmul.f32 %v1742, 0.020794416
    %v1791 = vsub.f32 0.10750557, %v1790
    %v1792 = vlog2.pop %v1789
    %v1793 = vmul.f32 %v1792, 0.6931472
    %v1794 = vmul.f32 %v1793, 0.03
    %v1795 = vsub.f32 %v1791, %v1794
    %v1796 = vmul.f32 %v1795, -48.089836
    %v1799 = vunpack.c.l.s4 269488144
    %v1800 = vunpack.c.0.s8 %v1799
    %v1801 = vperm.slane %v1796, %v1800
    %v1803 = vunpack.c.l.s4 842150450
    %v1804 = vunpack.c.0.s8 %v1803
    %v1805 = vperm.slane %v1796, %v1804
    %v1807 = vunpack.c.l.s4 1414812756
    %v1808 = vunpack.c.0.s8 %v1807
    %v1809 = vperm.slane %v1796, %v1808
    %v1811 = vunpack.c.l.s4 1987475062
    %v1812 = vunpack.c.0.s8 %v1811
    %v1813 = vperm.slane %v1796, %v1812
    %v1818 = vmin.f32 %v1307, %v1801
    %v1819 = vmin.f32 %v1308, %v1805
    %v1820 = vmin.f32 %v1309, %v1809
    %v1821 = vmin.f32 %v1310, %v1813
    %1826 = vst [vmem:[#allocation1] ss:$4 sm:$0xff] %v1818
    %s1827 = scalar_lea.vmem [#allocation1], 1
    %1828 = vst [vmem:[%s1827] ss:$4 sm:$0xff] %v1819
    %s1829 = scalar_lea.vmem [#allocation1], 2
    %1830 = vst [vmem:[%s1829] ss:$4 sm:$0xff] %v1820
    %s1831 = scalar_lea.vmem [#allocation1], 3
    %1832 = vst [vmem:[%s1831] ss:$4 sm:$0xff] %v1821
    %v1833 = vld.sshfl [vmem:[#allocation1] sm:$0xff pattern:$0x73625140]
    %v1834 = vld.sshfl [vmem:[#allocation1 + $0x8] sm:$0xff pattern:$0x73625140]
    %v1837 = vmax.f32 %v1833, %v1834
    %1838 = vmax.xlane.f32.xlu0 %v1837
    %v1839 = vpop.xlane.xlu0 %1838
    %v1842 = vunpack.c.l.s4 269488144
    %v1843 = vunpack.c.0.s8 %v1842
    %v1844 = vperm.slane %v1839, %v1843
    %v1846 = vunpack.c.l.s4 842150450
    %v1847 = vunpack.c.0.s8 %v1846
    %v1848 = vperm.slane %v1839, %v1847
    %v1850 = vunpack.c.l.s4 1414812756
    %v1851 = vunpack.c.0.s8 %v1850
    %v1852 = vperm.slane %v1839, %v1851
    %v1854 = vunpack.c.l.s4 1987475062
    %v1855 = vunpack.c.0.s8 %v1854
    %v1856 = vperm.slane %v1839, %v1855
    %v1861 = vsub.f32 %v1818, %v1844
    %v1862 = vsub.f32 %v1819, %v1848
    %v1863 = vsub.f32 %v1820, %v1852
    %v1864 = vsub.f32 %v1821, %v1856
    %v1865 = vpow.pop %v1861
    %v1866 = vpow.pop %v1862
    %v1867 = vpow.pop %v1863
    %v1868 = vpow.pop %v1864
    %1873 = vst [vmem:[#allocation1] ss:$4 sm:$0xff] %v1865
    %s1874 = scalar_lea.vmem [#allocation1], 1
    %1875 = vst [vmem:[%s1874] ss:$4 sm:$0xff] %v1866
    %s1876 = scalar_lea.vmem [#allocation1], 2
    %1877 = vst [vmem:[%s1876] ss:$4 sm:$0xff] %v1867
    %s1878 = scalar_lea.vmem [#allocation1], 3
    %1879 = vst [vmem:[%s1878] ss:$4 sm:$0xff] %v1868
    %v1880 = vld.sshfl [vmem:[#allocation1] sm:$0xff pattern:$0x73625140]
    %v1881 = vld.sshfl [vmem:[#allocation1 + $0x8] sm:$0xff pattern:$0x73625140]
    %v1884 = vadd.f32 %v1880, %v1881
    %1885 = vadd.xlane.f32.xlu0 %v1884
    %v1886 = vpop.xlane.xlu0 %1885
    %v1887 = vmul.f32 %v1839, 0.020794416
    %v1888 = vsub.f32 0.10750557, %v1887
    %v1889 = vlog2.pop %v1886
    %v1890 = vmul.f32 %v1889, 0.6931472
    %v1891 = vmul.f32 %v1890, 0.03
    %v1892 = vsub.f32 %v1888, %v1891
    %v1893 = vmul.f32 %v1892, 48.089836
    %v1896 = vunpack.c.l.s4 269488144
    %v1897 = vunpack.c.0.s8 %v1896
    %v1898 = vperm.slane %v1893, %v1897
    %v1900 = vunpack.c.l.s4 842150450
    %v1901 = vunpack.c.0.s8 %v1900
    %v1902 = vperm.slane %v1893, %v1901
    %v1904 = vunpack.c.l.s4 1414812756
    %v1905 = vunpack.c.0.s8 %v1904
    %v1906 = vperm.slane %v1893, %v1905
    %v1908 = vunpack.c.l.s4 1987475062
    %v1909 = vunpack.c.0.s8 %v1908
    %v1910 = vperm.slane %v1893, %v1909
    %v1915 = vadd.f32 %v1307, %v1898
    %v1916 = vadd.f32 %v1308, %v1902
    %v1917 = vadd.f32 %v1309, %v1906
    %v1918 = vadd.f32 %v1310, %v1910
    %v1919 = vmin.f32 %v1915, 0.0
    %v1920 = vmin.f32 %v1916, 0.0
    %v1921 = vmin.f32 %v1917, 0.0
    %v1922 = vmin.f32 %v1918, 0.0
    %v1923 = vpow.pop %v1919
    %v1924 = vpow.pop %v1920
    %v1925 = vpow.pop %v1921
    %v1926 = vpow.pop %v1922
    %1927 = vst [vmem:[#allocation5] sm:$0xf] %v1923
    %1928 = vst [vmem:[#allocation5 + $0x4] sm:$0xf] %v1924
    %1929 = vst [vmem:[#allocation5 + $0x8] sm:$0xf] %v1925
    %1930 = vst [vmem:[#allocation5 + $0xc] sm:$0xf] %v1926
    // Predicated region
    $region10: #{tpu_custom_call.1} parent=1 // pred_check
      _
    $region11: #{tpu_custom_call.1} parent=1 // pred_check_branch
      %1932 = sbr.rel (0) target = $region13
    $region12: #{tpu_custom_call.1} parent=1 // pred_region
      %1934 = vsyncadd [#allocation4], 192
      %s1935 = sshll.u32 [#allocation5], 4
      %s1936 = int_to_ptr.vmem [resolvable:$true] %s1935
      %s1937 = sshll.u32 %s1, 4
      %s1938 = int_to_ptr.hbm [resolvable:$true] %s1937
      %1943 = dma.vmem_to_hbm [thread:$0]  %s1936, 64, %s1938, [#allocation4], 64, 64, 4
    $region13: #{tpu_custom_call.1} parent=1 // pred_fallthru
      _
    // Predicated region
    $region14: #{tpu_custom_call.1} parent=1 // pred_check
      _
    $region15: #{tpu_custom_call.1} parent=1 // pred_check_branch
      %1945 = sbr.rel (0) target = $region17
    $region16: #{tpu_custom_call.1} parent=1 // pred_region
      %1947 = dma.done [#allocation4], 256
    $region17: #{tpu_custom_call.1} parent=1 // pred_fallthru
      _
    %1948 = vsyncpa [#allocation3], 1
    %1949 = vsyncpa [#allocation4], 1

</llo_original>
